<compile_context>
chip_gen: v6e
topology: v6e:2x2x1
jax: 0.10.0
libtpu: 0.0.40
codegen_flags: <defaults>
</compile_context>

<pallas_src>
import functools

import numpy as np

import jax
import jax.numpy as jnp
from jax import lax
from jax.experimental import pallas as pl
from jax.experimental.pallas import tpu as pltpu


# ---------------------------------------------------------------------------
# Static geometry (Actor(state_space=32) => 16x16x4 observations).
# ---------------------------------------------------------------------------
_H1 = _W1 = 16                    # conv1 spatial size
_H2 = _W2 = 7                     # conv2 spatial size (MaxPool2d(4,2) of 16)
_OH = _OW = 2                     # encoder output spatial size
_SEG = _H1 * _W1                  # 256 lanes per image in every slab (both stages)
_PAD = 128                        # interior lane offset inside the conv-input slab
_ROW1, _COL1 = _W1, 1             # stage-1 lane pitches (row, col) = (16, 1)
_ROW2, _COL2 = 2 * _ROW1, 2 * _COL1   # stage-2 *dilated* pitches = (32, 2)
_CIN1, _CIN2, _COUT = 4, 8, 8
_TAPS = tuple((sh, sw) for sh in (-1, 0, 1) for sw in (-1, 0, 1))       # 3x3 conv taps
_POOL = tuple((a, b) for a in range(4) for b in range(4))               # 4x4 pool window

_FEAT = _COUT * _OH * _OW         # 32 encoder features per image
_HIDDEN = 64
_ACT = 5

# Row layout of the packed weight operand (width 128, every start 8-aligned).
_R_W1, _R_W2, _R_LW, _R_LB, _R_HW, _R_HB = 0, 8, 16, 48, 56, 120
_PB_ROWS = 128


# ---------------------------------------------------------------------------
# In-kernel helpers.
# ---------------------------------------------------------------------------
def _tree_max(vals):
    """Balanced pairwise max tree: dependent-op depth 4 instead of a 15-deep chain."""
    while len(vals) > 1:
        nxt = [jnp.maximum(vals[i], vals[i + 1]) for i in range(0, len(vals) - 1, 2)]
        if len(vals) % 2:
            nxt.append(vals[-1])
        vals = nxt
    return vals[0]


# ---------------------------------------------------------------------------
# The fused kernel: encoder + MLP head + softmax for the whole batch at once.
#   x_ref : (B, 4, 256)   observation, flat row-major spatial
#   ma_ref: (18, B*256)   rows 0-8 conv1 tap masks, rows 9-17 conv2 tap masks (0/1)
#   wb_ref: (128, 128)    packed conv/linear weights+biases (see prepare_params)
#   xin   : (8, 128+B*256+128) conv input slab (zeroed margins = conv halo)
#   ts    : (72, B*256)   staged tap slab (K-fused conv operand; also reused by flatten)
#   yc    : (8, B*256+128) conv output / pool input slab (zeroed tail margin)
# ---------------------------------------------------------------------------
def _actor_kernel(x_ref, ma_ref, wb_ref, o_ref, xin, ts, yc, *, batch):
    f32 = jnp.float32
    lanes = batch * _SEG

    # -- zero ONLY the slab margins (interiors are fully overwritten each call) ----
    zpad = jnp.zeros((_COUT, _PAD), f32)
    xin[:, 0:_PAD] = zpad
    xin[:, _PAD + lanes:_PAD + lanes + _PAD] = zpad
    yc[:, lanes:lanes + _PAD] = zpad

    # -- both images lane-concatenated: channels on sublanes, flat spatial on lanes
    for b in range(batch):
        xin[0:_CIN1, _PAD + b * _SEG:_PAD + (b + 1) * _SEG] = x_ref[b]

    # ---- stage 1: Conv2d(4,8,3,p=1) + ReLU as ONE (8,36)@(36,B*256) matmul --------
    # Stage the 9 shifted, masked tap slices; the mask rows implement the zero
    # padding exactly and also kill any cross-image bleed of the shifted loads.
    for t, (sh, sw) in enumerate(_TAPS):
        off = _PAD + sh * _ROW1 + sw * _COL1
        ts[t * _CIN1:(t + 1) * _CIN1, :] = (
            xin[0:_CIN1, off:off + lanes] * ma_ref[t:t + 1, :])
    w1 = wb_ref[_R_W1:_R_W1 + _COUT, 0:9 * _CIN1]
    b1 = wb_ref[_R_W1:_R_W1 + _COUT, 9 * _CIN1:9 * _CIN1 + 1]
    y1 = jnp.maximum(
        jnp.dot(w1, ts[0:9 * _CIN1, :], preferred_element_type=f32) + b1, 0.0)
    yc[:, 0:lanes] = y1

    # ---- MaxPool2d(4,2) #1: 16 shifted loads, balanced max tree -------------------
    m1 = _tree_max([yc[:, a * _ROW1 + c * _COL1:a * _ROW1 + c * _COL1 + lanes]
                    for a, c in _POOL])
    # Pool-1 anchors (2i,2j) already live at lanes 32i+2j, which IS the stage-2
    # "dilated" layout (row pitch 32, col pitch 2): no stride-2 re-layout is needed.
    # Non-anchor lanes hold finite junk that mask2 / the pool-2 windows never read.

    # ---- stage 2: Conv2d(8,8,3,p=1) + ReLU on the dilated layout ------------------
    xin[0:_CIN2, _PAD:_PAD + lanes] = m1
    for t, (sh, sw) in enumerate(_TAPS):
        off = _PAD + sh * _ROW2 + sw * _COL2
        ts[t * _CIN2:(t + 1) * _CIN2, :] = (
            xin[0:_CIN2, off:off + lanes] * ma_ref[9 + t:10 + t, :])
    w2 = wb_ref[_R_W2:_R_W2 + _COUT, 0:9 * _CIN2]
    b2 = wb_ref[_R_W2:_R_W2 + _COUT, 9 * _CIN2:9 * _CIN2 + 1]
    y2 = jnp.maximum(
        jnp.dot(w2, ts[0:9 * _CIN2, :], preferred_element_type=f32) + b2, 0.0)
    yc[:, 0:lanes] = y2

    # ---- MaxPool2d(4,2) #2 (dilated window offsets) --------------------------------
    m2 = _tree_max([yc[:, a * _ROW2 + c * _COL2:a * _ROW2 + c * _COL2 + lanes]
                    for a, c in _POOL])

    # ---- Flatten in PyTorch (C,H,W) order, batched over images --------------------
    # All 4 pool-2 anchors per image ({0,4,64,68}) sit in the first 128 lanes of its
    # segment: stack those windows on sublanes (reusing `ts` as a tiny staging buffer).
    for b in range(batch):
        ts[b * _COUT:(b + 1) * _COUT, 0:128] = m2[:, b * _SEG:b * _SEG + 128]
    m2s = ts[0:batch * _COUT, 0:128]                                  # (8B, 128)

    # Tiny anchor-selection / channel-flatten matrices, generated in-kernel (no DMA).
    p_i = lax.broadcasted_iota(jnp.int32, (128, _FEAT), 0)
    q_i = lax.broadcasted_iota(jnp.int32, (128, _FEAT), 1)
    k = q_i & 3
    anchor = ((k >> 1) * (2 * _ROW2)) + ((k & 1) * (2 * _COL2))       # {0, 4, 64, 68}
    sel = (p_i == anchor).astype(f32)                                 # (128, 32)
    gath = jnp.dot(m2s, sel, preferred_element_type=f32)              # (8B, 32)

    r_i = lax.broadcasted_iota(jnp.int32, (batch * _COUT, _FEAT), 0)
    q2_i = lax.broadcasted_iota(jnp.int32, (batch * _COUT, _FEAT), 1)
    cmask = ((q2_i >> 2) == (r_i & 7)).astype(f32)                    # channel match
    b_i = lax.broadcasted_iota(jnp.int32, (batch, batch * _COUT), 0)
    r2_i = lax.broadcasted_iota(jnp.int32, (batch, batch * _COUT), 1)
    pick = ((r2_i >> 3) == b_i).astype(f32)                           # image-row select
    feats = jnp.dot(pick, gath * cmask, preferred_element_type=f32)   # (B, 32)

    # ---- Linear(32,64)+ReLU -> Linear(64,5) -> softmax, whole batch at once -------
    lw = wb_ref[_R_LW:_R_LW + _FEAT, 0:_HIDDEN]
    lb = wb_ref[_R_LB:_R_LB + 1, 0:_HIDDEN]
    hw = wb_ref[_R_HW:_R_HW + _HIDDEN, 0:_ACT]
    hb = wb_ref[_R_HB:_R_HB + 1, 0:_ACT]
    h = jnp.maximum(jnp.dot(feats, lw, preferred_element_type=f32) + lb, 0.0)
    logits = jnp.dot(h, hw, preferred_element_type=f32) + hb
    z = logits - jnp.max(logits, axis=1, keepdims=True)
    e = jnp.exp(z)
    o_ref[...] = e * pl.reciprocal(jnp.sum(e, axis=1, keepdims=True), approx=False)


# ---------------------------------------------------------------------------
# One-time parameter re-layout into the two packed kernel operands.
# ---------------------------------------------------------------------------
def _conv_tap_weights(w_oihw):
    """(O,I,3,3) torch conv weight -> (O, 9*I) with column t*I+ci, t = dh*3+dw."""
    o, i = w_oihw.shape[0], w_oihw.shape[1]
    return np.transpose(np.asarray(w_oihw), (0, 2, 3, 1)).reshape(o, 9 * i)


def _conv_masks(h, w, row_pitch, col_pitch, batch):
    """mask[t, p] == 1 iff position p is a valid image position AND its tap-t neighbour
    lies inside the true h x w image (== the conv's zero padding, and it also zeroes any
    cross-image / junk-lane reads of the shifted loads)."""
    m = np.zeros((9, batch * _SEG), np.float32)
    for t, (sh, sw) in enumerate(_TAPS):
        for b in range(batch):
            for r in range(h):
                for c in range(w):
                    if 0 <= r + sh < h and 0 <= c + sw < w:
                        m[t, b * _SEG + r * row_pitch + c * col_pitch] = 1.0
    return m


def prepare_params(params, batch):
    """Torch-layout parameters (conv OIHW, linear (out,in)) -> two packed f32 operands."""
    pack_masks = np.concatenate(
        [_conv_masks(_H1, _W1, _ROW1, _COL1, batch),
         _conv_masks(_H2, _W2, _ROW2, _COL2, batch)], axis=0)          # (18, B*256)

    pb = np.zeros((_PB_ROWS, 128), np.float32)
    pb[_R_W1:_R_W1 + _COUT, 0:9 * _CIN1] = _conv_tap_weights(params["conv1_w"])
    pb[_R_W1:_R_W1 + _COUT, 9 * _CIN1] = np.asarray(params["conv1_b"])
    pb[_R_W2:_R_W2 + _COUT, 0:9 * _CIN2] = _conv_tap_weights(params["conv2_w"])
    pb[_R_W2:_R_W2 + _COUT, 9 * _CIN2] = np.asarray(params["conv2_b"])
    pb[_R_LW:_R_LW + _FEAT, 0:_HIDDEN] = np.asarray(params["lin_w"]).T
    pb[_R_LB, 0:_HIDDEN] = np.asarray(params["lin_b"])
    pb[_R_HW:_R_HW + _HIDDEN, 0:_ACT] = np.asarray(params["head_w"]).T
    pb[_R_HB, 0:_ACT] = np.asarray(params["head_b"])
    return jnp.asarray(pack_masks), jnp.asarray(pb)


@jax.jit
def actor_forward(x_nchw, pack_masks, pack_weights):
    """Actor.forward (cnn=True): (B, 4, 16, 16) NCHW -> (B, action_space) probs."""
    B, C, H, W = x_nchw.shape
    assert C == _CIN1 and H * W == _SEG, (C, H, W)
    x_flat = x_nchw.reshape(B, C, H * W)        # contiguous reshape: no data movement
    lanes = B * _SEG
    kernel = functools.partial(_actor_kernel, batch=B)
    return pl.pallas_call(
        kernel,
        out_shape=jax.ShapeDtypeStruct((B, _ACT), jnp.float32),
        scratch_shapes=[
            pltpu.VMEM((_CIN2, _PAD + lanes + _PAD), jnp.float32),   # conv input slab
            pltpu.VMEM((9 * _CIN2, lanes), jnp.float32),             # staged tap slab
            pltpu.VMEM((_COUT, lanes + _PAD), jnp.float32),          # conv out / pool slab
        ],
    )(x_flat, pack_masks, pack_weights)


# ---------------------------------------------------------------------------
# Deterministic parameter init (torch layouts) and a pure-JAX reference.
# ---------------------------------------------------------------------------
def init_params(key, state_space=32, action_space=5, hidden=64):
    ks = jax.random.split(key, 8)
    s = 0.1
    return {
        "conv1_w": jax.random.normal(ks[0], (8, 4, 3, 3), jnp.float32) * s,
        "conv1_b": jax.random.normal(ks[1], (8,), jnp.float32) * s,
        "conv2_w": jax.random.normal(ks[2], (8, 8, 3, 3), jnp.float32) * s,
        "conv2_b": jax.random.normal(ks[3], (8,), jnp.float32) * s,
        "lin_w": jax.random.normal(ks[4], (hidden, state_space), jnp.float32) * s,
        "lin_b": jax.random.normal(ks[5], (hidden,), jnp.float32) * s,
        "head_w": jax.random.normal(ks[6], (action_space, hidden), jnp.float32) * s,
        "head_b": jax.random.normal(ks[7], (action_space,), jnp.float32) * s,
    }


def actor_reference(x_nchw, params):
    dn = ("NCHW", "OIHW", "NCHW")
    y = lax.conv_general_dilated(x_nchw, params["conv1_w"], (1, 1),
                                 ((1, 1), (1, 1)), dimension_numbers=dn)
    y = jax.nn.relu(y + params["conv1_b"][None, :, None, None])
    y = lax.reduce_window(y, -jnp.inf, lax.max, (1, 1, 4, 4), (1, 1, 2, 2), "VALID")
    y = lax.conv_general_dilated(y, params["conv2_w"], (1, 1),
                                 ((1, 1), (1, 1)), dimension_numbers=dn)
    y = jax.nn.relu(y + params["conv2_b"][None, :, None, None])
    y = lax.reduce_window(y, -jnp.inf, lax.max, (1, 1, 4, 4), (1, 1, 2, 2), "VALID")
    f = y.reshape(y.shape[0], -1)
    h = jax.nn.relu(f @ params["lin_w"].T + params["lin_b"])
    logits = h @ params["head_w"].T + params["head_b"]
    return jax.nn.softmax(logits, axis=1)


if __name__ == "__main__":
    key = jax.random.PRNGKey(0)
    kx, kparam = jax.random.split(key)
    x = jax.random.normal(kx, (2, 4, 16, 16), jnp.float32)   # NCHW, like torch
    params = init_params(kparam, state_space=32, action_space=5, hidden=64)
    pack_masks, pack_weights = prepare_params(params, batch=x.shape[0])

    probs = jax.block_until_ready(actor_forward(x, pack_masks, pack_weights))
    ref = actor_reference(x, params)

    assert probs.shape == (2, _ACT), probs.shape
    assert bool(jnp.allclose(jnp.sum(probs, axis=1), 1.0, atol=1e-5))
    assert bool(jnp.allclose(probs, ref, atol=1e-4, rtol=1e-4)), (probs, ref)
    print("KERNEL_OK")
</pallas_src>

<mosaic_0001>
module attributes {stable_mosaic.version = 11 : i64} {
  func.func @_actor_kernel(%arg0: memref<2x4x256xf32, #tpu.memory_space<vmem>>, %arg1: memref<18x512xf32, #tpu.memory_space<vmem>>, %arg2: memref<128x128xf32, #tpu.memory_space<vmem>>, %arg3: memref<2x5xf32, #tpu.memory_space<vmem>>, %arg4: memref<8x768xf32, #tpu.memory_space<vmem>>, %arg5: memref<72x512xf32, #tpu.memory_space<vmem>>, %arg6: memref<8x640xf32, #tpu.memory_space<vmem>>) attributes {dimension_semantics = [], scalar_prefetch = 0 : i64, scratch_operands = 3 : i64, tpu.core_type = #tpu.core_type<tc>} {
    %cst = arith.constant 0.000000e+00 : f32
    %0 = vector.broadcast %cst : f32 to vector<8x128xf32>
    %c0 = arith.constant 0 : index
    %c0_0 = arith.constant 0 : index
    %1 = vector.load %arg4[%c0, %c0_0] : memref<8x768xf32, #tpu.memory_space<vmem>>, vector<8x128xf32>
    tpu.vector_store %arg4[%c0, %c0_0], %0 {strides = array<i32>} : memref<8x768xf32, #tpu.memory_space<vmem>>, vector<8x128xf32>,
    %c0_1 = arith.constant 0 : index
    %c640 = arith.constant 640 : index
    %2 = vector.load %arg4[%c0_1, %c640] : memref<8x768xf32, #tpu.memory_space<vmem>>, vector<8x128xf32>
    tpu.vector_store %arg4[%c0_1, %c640], %0 {strides = array<i32>} : memref<8x768xf32, #tpu.memory_space<vmem>>, vector<8x128xf32>,
    %c0_2 = arith.constant 0 : index
    %c512 = arith.constant 512 : index
    %3 = vector.load %arg6[%c0_2, %c512] : memref<8x640xf32, #tpu.memory_space<vmem>>, vector<8x128xf32>
    tpu.vector_store %arg6[%c0_2, %c512], %0 {strides = array<i32>} : memref<8x640xf32, #tpu.memory_space<vmem>>, vector<8x128xf32>,
    %c0_3 = arith.constant 0 : index
    %c0_4 = arith.constant 0 : index
    %c0_5 = arith.constant 0 : index
    %4 = vector.load %arg0[%c0_3, %c0_4, %c0_5] : memref<2x4x256xf32, #tpu.memory_space<vmem>>, vector<1x4x256xf32>
    %5 = vector.shape_cast %4 : vector<1x4x256xf32> to vector<4x256xf32>
    %c0_6 = arith.constant 0 : index
    %c128 = arith.constant 128 : index
    %6 = vector.load %arg4[%c0_6, %c128] : memref<8x768xf32, #tpu.memory_space<vmem>>, vector<4x256xf32>
    tpu.vector_store %arg4[%c0_6, %c128], %5 {strides = array<i32>} : memref<8x768xf32, #tpu.memory_space<vmem>>, vector<4x256xf32>,
    %c1 = arith.constant 1 : index
    %c0_7 = arith.constant 0 : index
    %c0_8 = arith.constant 0 : index
    %7 = vector.load %arg0[%c1, %c0_7, %c0_8] : memref<2x4x256xf32, #tpu.memory_space<vmem>>, vector<1x4x256xf32>
    %8 = vector.shape_cast %7 : vector<1x4x256xf32> to vector<4x256xf32>
    %c0_9 = arith.constant 0 : index
    %c384 = arith.constant 384 : index
    %9 = vector.load %arg4[%c0_9, %c384] : memref<8x768xf32, #tpu.memory_space<vmem>>, vector<4x256xf32>
    tpu.vector_store %arg4[%c0_9, %c384], %8 {strides = array<i32>} : memref<8x768xf32, #tpu.memory_space<vmem>>, vector<4x256xf32>,
    %c0_10 = arith.constant 0 : index
    %c111 = arith.constant 111 : index
    %10 = vector.load %arg4[%c0_10, %c111] : memref<8x768xf32, #tpu.memory_space<vmem>>, vector<4x512xf32>
    %c0_11 = arith.constant 0 : index
    %c0_12 = arith.constant 0 : index
    %11 = vector.load %arg1[%c0_11, %c0_12] : memref<18x512xf32, #tpu.memory_space<vmem>>, vector<1x512xf32>
    %12 = vector.broadcast %11 : vector<1x512xf32> to vector<4x512xf32>
    %13 = arith.mulf %10, %12 : vector<4x512xf32>
    %c0_13 = arith.constant 0 : index
    %c0_14 = arith.constant 0 : index
    %14 = vector.load %arg5[%c0_13, %c0_14] : memref<72x512xf32, #tpu.memory_space<vmem>>, vector<4x512xf32>
    tpu.vector_store %arg5[%c0_13, %c0_14], %13 {strides = array<i32>} : memref<72x512xf32, #tpu.memory_space<vmem>>, vector<4x512xf32>,
    %c0_15 = arith.constant 0 : index
    %c112 = arith.constant 112 : index
    %15 = vector.load %arg4[%c0_15, %c112] : memref<8x768xf32, #tpu.memory_space<vmem>>, vector<4x512xf32>
    %c1_16 = arith.constant 1 : index
    %c0_17 = arith.constant 0 : index
    %16 = vector.load %arg1[%c1_16, %c0_17] : memref<18x512xf32, #tpu.memory_space<vmem>>, vector<1x512xf32>
    %17 = vector.broadcast %16 : vector<1x512xf32> to vector<4x512xf32>
    %18 = arith.mulf %15, %17 : vector<4x512xf32>
    %c4 = arith.constant 4 : index
    %c0_18 = arith.constant 0 : index
    %19 = vector.load %arg5[%c4, %c0_18] : memref<72x512xf32, #tpu.memory_space<vmem>>, vector<4x512xf32>
    tpu.vector_store %arg5[%c4, %c0_18], %18 {strides = array<i32>} : memref<72x512xf32, #tpu.memory_space<vmem>>, vector<4x512xf32>,
    %c0_19 = arith.constant 0 : index
    %c113 = arith.constant 113 : index
    %20 = vector.load %arg4[%c0_19, %c113] : memref<8x768xf32, #tpu.memory_space<vmem>>, vector<4x512xf32>
    %c2 = arith.constant 2 : index
    %c0_20 = arith.constant 0 : index
    %21 = vector.load %arg1[%c2, %c0_20] : memref<18x512xf32, #tpu.memory_space<vmem>>, vector<1x512xf32>
    %22 = vector.broadcast %21 : vector<1x512xf32> to vector<4x512xf32>
    %23 = arith.mulf %20, %22 : vector<4x512xf32>
    %c8 = arith.constant 8 : index
    %c0_21 = arith.constant 0 : index
    %24 = vector.load %arg5[%c8, %c0_21] : memref<72x512xf32, #tpu.memory_space<vmem>>, vector<4x512xf32>
    tpu.vector_store %arg5[%c8, %c0_21], %23 {strides = array<i32>} : memref<72x512xf32, #tpu.memory_space<vmem>>, vector<4x512xf32>,
    %c0_22 = arith.constant 0 : index
    %c127 = arith.constant 127 : index
    %25 = vector.load %arg4[%c0_22, %c127] : memref<8x768xf32, #tpu.memory_space<vmem>>, vector<4x512xf32>
    %c3 = arith.constant 3 : index
    %c0_23 = arith.constant 0 : index
    %26 = vector.load %arg1[%c3, %c0_23] : memref<18x512xf32, #tpu.memory_space<vmem>>, vector<1x512xf32>
    %27 = vector.broadcast %26 : vector<1x512xf32> to vector<4x512xf32>
    %28 = arith.mulf %25, %27 : vector<4x512xf32>
    %c12 = arith.constant 12 : index
    %c0_24 = arith.constant 0 : index
    %29 = vector.load %arg5[%c12, %c0_24] : memref<72x512xf32, #tpu.memory_space<vmem>>, vector<4x512xf32>
    tpu.vector_store %arg5[%c12, %c0_24], %28 {strides = array<i32>} : memref<72x512xf32, #tpu.memory_space<vmem>>, vector<4x512xf32>,
    %c0_25 = arith.constant 0 : index
    %c128_26 = arith.constant 128 : index
    %30 = vector.load %arg4[%c0_25, %c128_26] : memref<8x768xf32, #tpu.memory_space<vmem>>, vector<4x512xf32>
    %c4_27 = arith.constant 4 : index
    %c0_28 = arith.constant 0 : index
    %31 = vector.load %arg1[%c4_27, %c0_28] : memref<18x512xf32, #tpu.memory_space<vmem>>, vector<1x512xf32>
    %32 = vector.broadcast %31 : vector<1x512xf32> to vector<4x512xf32>
    %33 = arith.mulf %30, %32 : vector<4x512xf32>
    %c16 = arith.constant 16 : index
    %c0_29 = arith.constant 0 : index
    %34 = vector.load %arg5[%c16, %c0_29] : memref<72x512xf32, #tpu.memory_space<vmem>>, vector<4x512xf32>
    tpu.vector_store %arg5[%c16, %c0_29], %33 {strides = array<i32>} : memref<72x512xf32, #tpu.memory_space<vmem>>, vector<4x512xf32>,
    %c0_30 = arith.constant 0 : index
    %c129 = arith.constant 129 : index
    %35 = vector.load %arg4[%c0_30, %c129] : memref<8x768xf32, #tpu.memory_space<vmem>>, vector<4x512xf32>
    %c5 = arith.constant 5 : index
    %c0_31 = arith.constant 0 : index
    %36 = vector.load %arg1[%c5, %c0_31] : memref<18x512xf32, #tpu.memory_space<vmem>>, vector<1x512xf32>
    %37 = vector.broadcast %36 : vector<1x512xf32> to vector<4x512xf32>
    %38 = arith.mulf %35, %37 : vector<4x512xf32>
    %c20 = arith.constant 20 : index
    %c0_32 = arith.constant 0 : index
    %39 = vector.load %arg5[%c20, %c0_32] : memref<72x512xf32, #tpu.memory_space<vmem>>, vector<4x512xf32>
    tpu.vector_store %arg5[%c20, %c0_32], %38 {strides = array<i32>} : memref<72x512xf32, #tpu.memory_space<vmem>>, vector<4x512xf32>,
    %c0_33 = arith.constant 0 : index
    %c143 = arith.constant 143 : index
    %40 = vector.load %arg4[%c0_33, %c143] : memref<8x768xf32, #tpu.memory_space<vmem>>, vector<4x512xf32>
    %c6 = arith.constant 6 : index
    %c0_34 = arith.constant 0 : index
    %41 = vector.load %arg1[%c6, %c0_34] : memref<18x512xf32, #tpu.memory_space<vmem>>, vector<1x512xf32>
    %42 = vector.broadcast %41 : vector<1x512xf32> to vector<4x512xf32>
    %43 = arith.mulf %40, %42 : vector<4x512xf32>
    %c24 = arith.constant 24 : index
    %c0_35 = arith.constant 0 : index
    %44 = vector.load %arg5[%c24, %c0_35] : memref<72x512xf32, #tpu.memory_space<vmem>>, vector<4x512xf32>
    tpu.vector_store %arg5[%c24, %c0_35], %43 {strides = array<i32>} : memref<72x512xf32, #tpu.memory_space<vmem>>, vector<4x512xf32>,
    %c0_36 = arith.constant 0 : index
    %c144 = arith.constant 144 : index
    %45 = vector.load %arg4[%c0_36, %c144] : memref<8x768xf32, #tpu.memory_space<vmem>>, vector<4x512xf32>
    %c7 = arith.constant 7 : index
    %c0_37 = arith.constant 0 : index
    %46 = vector.load %arg1[%c7, %c0_37] : memref<18x512xf32, #tpu.memory_space<vmem>>, vector<1x512xf32>
    %47 = vector.broadcast %46 : vector<1x512xf32> to vector<4x512xf32>
    %48 = arith.mulf %45, %47 : vector<4x512xf32>
    %c28 = arith.constant 28 : index
    %c0_38 = arith.constant 0 : index
    %49 = vector.load %arg5[%c28, %c0_38] : memref<72x512xf32, #tpu.memory_space<vmem>>, vector<4x512xf32>
    tpu.vector_store %arg5[%c28, %c0_38], %48 {strides = array<i32>} : memref<72x512xf32, #tpu.memory_space<vmem>>, vector<4x512xf32>,
    %c0_39 = arith.constant 0 : index
    %c145 = arith.constant 145 : index
    %50 = vector.load %arg4[%c0_39, %c145] : memref<8x768xf32, #tpu.memory_space<vmem>>, vector<4x512xf32>
    %c8_40 = arith.constant 8 : index
    %c0_41 = arith.constant 0 : index
    %51 = vector.load %arg1[%c8_40, %c0_41] : memref<18x512xf32, #tpu.memory_space<vmem>>, vector<1x512xf32>
    %52 = vector.broadcast %51 : vector<1x512xf32> to vector<4x512xf32>
    %53 = arith.mulf %50, %52 : vector<4x512xf32>
    %c32 = arith.constant 32 : index
    %c0_42 = arith.constant 0 : index
    %54 = vector.load %arg5[%c32, %c0_42] : memref<72x512xf32, #tpu.memory_space<vmem>>, vector<4x512xf32>
    tpu.vector_store %arg5[%c32, %c0_42], %53 {strides = array<i32>} : memref<72x512xf32, #tpu.memory_space<vmem>>, vector<4x512xf32>,
    %c0_43 = arith.constant 0 : index
    %c0_44 = arith.constant 0 : index
    %55 = vector.load %arg2[%c0_43, %c0_44] : memref<128x128xf32, #tpu.memory_space<vmem>>, vector<8x36xf32>
    %c0_45 = arith.constant 0 : index
    %c36 = arith.constant 36 : index
    %56 = vector.load %arg2[%c0_45, %c36] : memref<128x128xf32, #tpu.memory_space<vmem>>, vector<8x1xf32>
    %c0_46 = arith.constant 0 : index
    %c0_47 = arith.constant 0 : index
    %57 = vector.load %arg5[%c0_46, %c0_47] : memref<72x512xf32, #tpu.memory_space<vmem>>, vector<36x512xf32>
    %cst_48 = arith.constant dense<0.000000e+00> : vector<8x512xf32>
    %58 = tpu.matmul %55, %57, %cst_48 {dimension_numbers = #tpu.dot_dimension_numbers<[1], [0], [0], [1], [0, 0, 1, 1], [], []>} : vector<8x36xf32>, vector<36x512xf32>, vector<8x512xf32> -> vector<8x512xf32>
    %59 = vector.broadcast %56 : vector<8x1xf32> to vector<8x512xf32>
    %60 = arith.addf %58, %59 : vector<8x512xf32>
    %cst_49 = arith.constant 0.000000e+00 : f32
    %61 = vector.broadcast %cst_49 : f32 to vector<8x512xf32>
    %62 = arith.maximumf %60, %61 : vector<8x512xf32>
    %c0_50 = arith.constant 0 : index
    %c0_51 = arith.constant 0 : index
    %63 = vector.load %arg6[%c0_50, %c0_51] : memref<8x640xf32, #tpu.memory_space<vmem>>, vector<8x512xf32>
    tpu.vector_store %arg6[%c0_50, %c0_51], %62 {strides = array<i32>} : memref<8x640xf32, #tpu.memory_space<vmem>>, vector<8x512xf32>,
    %c0_52 = arith.constant 0 : index
    %c0_53 = arith.constant 0 : index
    %64 = vector.load %arg6[%c0_52, %c0_53] : memref<8x640xf32, #tpu.memory_space<vmem>>, vector<8x512xf32>
    %c0_54 = arith.constant 0 : index
    %c1_55 = arith.constant 1 : index
    %65 = vector.load %arg6[%c0_54, %c1_55] : memref<8x640xf32, #tpu.memory_space<vmem>>, vector<8x512xf32>
    %c0_56 = arith.constant 0 : index
    %c2_57 = arith.constant 2 : index
    %66 = vector.load %arg6[%c0_56, %c2_57] : memref<8x640xf32, #tpu.memory_space<vmem>>, vector<8x512xf32>
    %c0_58 = arith.constant 0 : index
    %c3_59 = arith.constant 3 : index
    %67 = vector.load %arg6[%c0_58, %c3_59] : memref<8x640xf32, #tpu.memory_space<vmem>>, vector<8x512xf32>
    %c0_60 = arith.constant 0 : index
    %c16_61 = arith.constant 16 : index
    %68 = vector.load %arg6[%c0_60, %c16_61] : memref<8x640xf32, #tpu.memory_space<vmem>>, vector<8x512xf32>
    %c0_62 = arith.constant 0 : index
    %c17 = arith.constant 17 : index
    %69 = vector.load %arg6[%c0_62, %c17] : memref<8x640xf32, #tpu.memory_space<vmem>>, vector<8x512xf32>
    %c0_63 = arith.constant 0 : index
    %c18 = arith.constant 18 : index
    %70 = vector.load %arg6[%c0_63, %c18] : memref<8x640xf32, #tpu.memory_space<vmem>>, vector<8x512xf32>
    %c0_64 = arith.constant 0 : index
    %c19 = arith.constant 19 : index
    %71 = vector.load %arg6[%c0_64, %c19] : memref<8x640xf32, #tpu.memory_space<vmem>>, vector<8x512xf32>
    %c0_65 = arith.constant 0 : index
    %c32_66 = arith.constant 32 : index
    %72 = vector.load %arg6[%c0_65, %c32_66] : memref<8x640xf32, #tpu.memory_space<vmem>>, vector<8x512xf32>
    %c0_67 = arith.constant 0 : index
    %c33 = arith.constant 33 : index
    %73 = vector.load %arg6[%c0_67, %c33] : memref<8x640xf32, #tpu.memory_space<vmem>>, vector<8x512xf32>
    %c0_68 = arith.constant 0 : index
    %c34 = arith.constant 34 : index
    %74 = vector.load %arg6[%c0_68, %c34] : memref<8x640xf32, #tpu.memory_space<vmem>>, vector<8x512xf32>
    %c0_69 = arith.constant 0 : index
    %c35 = arith.constant 35 : index
    %75 = vector.load %arg6[%c0_69, %c35] : memref<8x640xf32, #tpu.memory_space<vmem>>, vector<8x512xf32>
    %c0_70 = arith.constant 0 : index
    %c48 = arith.constant 48 : index
    %76 = vector.load %arg6[%c0_70, %c48] : memref<8x640xf32, #tpu.memory_space<vmem>>, vector<8x512xf32>
    %c0_71 = arith.constant 0 : index
    %c49 = arith.constant 49 : index
    %77 = vector.load %arg6[%c0_71, %c49] : memref<8x640xf32, #tpu.memory_space<vmem>>, vector<8x512xf32>
    %c0_72 = arith.constant 0 : index
    %c50 = arith.constant 50 : index
    %78 = vector.load %arg6[%c0_72, %c50] : memref<8x640xf32, #tpu.memory_space<vmem>>, vector<8x512xf32>
    %c0_73 = arith.constant 0 : index
    %c51 = arith.constant 51 : index
    %79 = vector.load %arg6[%c0_73, %c51] : memref<8x640xf32, #tpu.memory_space<vmem>>, vector<8x512xf32>
    %80 = arith.maximumf %64, %65 : vector<8x512xf32>
    %81 = arith.maximumf %66, %67 : vector<8x512xf32>
    %82 = arith.maximumf %68, %69 : vector<8x512xf32>
    %83 = arith.maximumf %70, %71 : vector<8x512xf32>
    %84 = arith.maximumf %72, %73 : vector<8x512xf32>
    %85 = arith.maximumf %74, %75 : vector<8x512xf32>
    %86 = arith.maximumf %76, %77 : vector<8x512xf32>
    %87 = arith.maximumf %78, %79 : vector<8x512xf32>
    %88 = arith.maximumf %80, %81 : vector<8x512xf32>
    %89 = arith.maximumf %82, %83 : vector<8x512xf32>
    %90 = arith.maximumf %84, %85 : vector<8x512xf32>
    %91 = arith.maximumf %86, %87 : vector<8x512xf32>
    %92 = arith.maximumf %88, %89 : vector<8x512xf32>
    %93 = arith.maximumf %90, %91 : vector<8x512xf32>
    %94 = arith.maximumf %92, %93 : vector<8x512xf32>
    %c0_74 = arith.constant 0 : index
    %c128_75 = arith.constant 128 : index
    %95 = vector.load %arg4[%c0_74, %c128_75] : memref<8x768xf32, #tpu.memory_space<vmem>>, vector<8x512xf32>
    tpu.vector_store %arg4[%c0_74, %c128_75], %94 {strides = array<i32>} : memref<8x768xf32, #tpu.memory_space<vmem>>, vector<8x512xf32>,
    %c0_76 = arith.constant 0 : index
    %c94 = arith.constant 94 : index
    %96 = vector.load %arg4[%c0_76, %c94] : memref<8x768xf32, #tpu.memory_space<vmem>>, vector<8x512xf32>
    %c9 = arith.constant 9 : index
    %c0_77 = arith.constant 0 : index
    %97 = vector.load %arg1[%c9, %c0_77] : memref<18x512xf32, #tpu.memory_space<vmem>>, vector<1x512xf32>
    %98 = vector.broadcast %97 : vector<1x512xf32> to vector<8x512xf32>
    %99 = arith.mulf %96, %98 : vector<8x512xf32>
    %c0_78 = arith.constant 0 : index
    %c0_79 = arith.constant 0 : index
    %100 = vector.load %arg5[%c0_78, %c0_79] : memref<72x512xf32, #tpu.memory_space<vmem>>, vector<8x512xf32>
    tpu.vector_store %arg5[%c0_78, %c0_79], %99 {strides = array<i32>} : memref<72x512xf32, #tpu.memory_space<vmem>>, vector<8x512xf32>,
    %c0_80 = arith.constant 0 : index
    %c96 = arith.constant 96 : index
    %101 = vector.load %arg4[%c0_80, %c96] : memref<8x768xf32, #tpu.memory_space<vmem>>, vector<8x512xf32>
    %c10 = arith.constant 10 : index
    %c0_81 = arith.constant 0 : index
    %102 = vector.load %arg1[%c10, %c0_81] : memref<18x512xf32, #tpu.memory_space<vmem>>, vector<1x512xf32>
    %103 = vector.broadcast %102 : vector<1x512xf32> to vector<8x512xf32>
    %104 = arith.mulf %101, %103 : vector<8x512xf32>
    %c8_82 = arith.constant 8 : index
    %c0_83 = arith.constant 0 : index
    %105 = vector.load %arg5[%c8_82, %c0_83] : memref<72x512xf32, #tpu.memory_space<vmem>>, vector<8x512xf32>
    tpu.vector_store %arg5[%c8_82, %c0_83], %104 {strides = array<i32>} : memref<72x512xf32, #tpu.memory_space<vmem>>, vector<8x512xf32>,
    %c0_84 = arith.constant 0 : index
    %c98 = arith.constant 98 : index
    %106 = vector.load %arg4[%c0_84, %c98] : memref<8x768xf32, #tpu.memory_space<vmem>>, vector<8x512xf32>
    %c11 = arith.constant 11 : index
    %c0_85 = arith.constant 0 : index
    %107 = vector.load %arg1[%c11, %c0_85] : memref<18x512xf32, #tpu.memory_space<vmem>>, vector<1x512xf32>
    %108 = vector.broadcast %107 : vector<1x512xf32> to vector<8x512xf32>
    %109 = arith.mulf %106, %108 : vector<8x512xf32>
    %c16_86 = arith.constant 16 : index
    %c0_87 = arith.constant 0 : index
    %110 = vector.load %arg5[%c16_86, %c0_87] : memref<72x512xf32, #tpu.memory_space<vmem>>, vector<8x512xf32>
    tpu.vector_store %arg5[%c16_86, %c0_87], %109 {strides = array<i32>} : memref<72x512xf32, #tpu.memory_space<vmem>>, vector<8x512xf32>,
    %c0_88 = arith.constant 0 : index
    %c126 = arith.constant 126 : index
    %111 = vector.load %arg4[%c0_88, %c126] : memref<8x768xf32, #tpu.memory_space<vmem>>, vector<8x512xf32>
    %c12_89 = arith.constant 12 : index
    %c0_90 = arith.constant 0 : index
    %112 = vector.load %arg1[%c12_89, %c0_90] : memref<18x512xf32, #tpu.memory_space<vmem>>, vector<1x512xf32>
    %113 = vector.broadcast %112 : vector<1x512xf32> to vector<8x512xf32>
    %114 = arith.mulf %111, %113 : vector<8x512xf32>
    %c24_91 = arith.constant 24 : index
    %c0_92 = arith.constant 0 : index
    %115 = vector.load %arg5[%c24_91, %c0_92] : memref<72x512xf32, #tpu.memory_space<vmem>>, vector<8x512xf32>
    tpu.vector_store %arg5[%c24_91, %c0_92], %114 {strides = array<i32>} : memref<72x512xf32, #tpu.memory_space<vmem>>, vector<8x512xf32>,
    %c0_93 = arith.constant 0 : index
    %c128_94 = arith.constant 128 : index
    %116 = vector.load %arg4[%c0_93, %c128_94] : memref<8x768xf32, #tpu.memory_space<vmem>>, vector<8x512xf32>
    %c13 = arith.constant 13 : index
    %c0_95 = arith.constant 0 : index
    %117 = vector.load %arg1[%c13, %c0_95] : memref<18x512xf32, #tpu.memory_space<vmem>>, vector<1x512xf32>
    %118 = vector.broadcast %117 : vector<1x512xf32> to vector<8x512xf32>
    %119 = arith.mulf %116, %118 : vector<8x512xf32>
    %c32_96 = arith.constant 32 : index
    %c0_97 = arith.constant 0 : index
    %120 = vector.load %arg5[%c32_96, %c0_97] : memref<72x512xf32, #tpu.memory_space<vmem>>, vector<8x512xf32>
    tpu.vector_store %arg5[%c32_96, %c0_97], %119 {strides = array<i32>} : memref<72x512xf32, #tpu.memory_space<vmem>>, vector<8x512xf32>,
    %c0_98 = arith.constant 0 : index
    %c130 = arith.constant 130 : index
    %121 = vector.load %arg4[%c0_98, %c130] : memref<8x768xf32, #tpu.memory_space<vmem>>, vector<8x512xf32>
    %c14 = arith.constant 14 : index
    %c0_99 = arith.constant 0 : index
    %122 = vector.load %arg1[%c14, %c0_99] : memref<18x512xf32, #tpu.memory_space<vmem>>, vector<1x512xf32>
    %123 = vector.broadcast %122 : vector<1x512xf32> to vector<8x512xf32>
    %124 = arith.mulf %121, %123 : vector<8x512xf32>
    %c40 = arith.constant 40 : index
    %c0_100 = arith.constant 0 : index
    %125 = vector.load %arg5[%c40, %c0_100] : memref<72x512xf32, #tpu.memory_space<vmem>>, vector<8x512xf32>
    tpu.vector_store %arg5[%c40, %c0_100], %124 {strides = array<i32>} : memref<72x512xf32, #tpu.memory_space<vmem>>, vector<8x512xf32>,
    %c0_101 = arith.constant 0 : index
    %c158 = arith.constant 158 : index
    %126 = vector.load %arg4[%c0_101, %c158] : memref<8x768xf32, #tpu.memory_space<vmem>>, vector<8x512xf32>
    %c15 = arith.constant 15 : index
    %c0_102 = arith.constant 0 : index
    %127 = vector.load %arg1[%c15, %c0_102] : memref<18x512xf32, #tpu.memory_space<vmem>>, vector<1x512xf32>
    %128 = vector.broadcast %127 : vector<1x512xf32> to vector<8x512xf32>
    %129 = arith.mulf %126, %128 : vector<8x512xf32>
    %c48_103 = arith.constant 48 : index
    %c0_104 = arith.constant 0 : index
    %130 = vector.load %arg5[%c48_103, %c0_104] : memref<72x512xf32, #tpu.memory_space<vmem>>, vector<8x512xf32>
    tpu.vector_store %arg5[%c48_103, %c0_104], %129 {strides = array<i32>} : memref<72x512xf32, #tpu.memory_space<vmem>>, vector<8x512xf32>,
    %c0_105 = arith.constant 0 : index
    %c160 = arith.constant 160 : index
    %131 = vector.load %arg4[%c0_105, %c160] : memref<8x768xf32, #tpu.memory_space<vmem>>, vector<8x512xf32>
    %c16_106 = arith.constant 16 : index
    %c0_107 = arith.constant 0 : index
    %132 = vector.load %arg1[%c16_106, %c0_107] : memref<18x512xf32, #tpu.memory_space<vmem>>, vector<1x512xf32>
    %133 = vector.broadcast %132 : vector<1x512xf32> to vector<8x512xf32>
    %134 = arith.mulf %131, %133 : vector<8x512xf32>
    %c56 = arith.constant 56 : index
    %c0_108 = arith.constant 0 : index
    %135 = vector.load %arg5[%c56, %c0_108] : memref<72x512xf32, #tpu.memory_space<vmem>>, vector<8x512xf32>
    tpu.vector_store %arg5[%c56, %c0_108], %134 {strides = array<i32>} : memref<72x512xf32, #tpu.memory_space<vmem>>, vector<8x512xf32>,
    %c0_109 = arith.constant 0 : index
    %c162 = arith.constant 162 : index
    %136 = vector.load %arg4[%c0_109, %c162] : memref<8x768xf32, #tpu.memory_space<vmem>>, vector<8x512xf32>
    %c17_110 = arith.constant 17 : index
    %c0_111 = arith.constant 0 : index
    %137 = vector.load %arg1[%c17_110, %c0_111] : memref<18x512xf32, #tpu.memory_space<vmem>>, vector<1x512xf32>
    %138 = vector.broadcast %137 : vector<1x512xf32> to vector<8x512xf32>
    %139 = arith.mulf %136, %138 : vector<8x512xf32>
    %c64 = arith.constant 64 : index
    %c0_112 = arith.constant 0 : index
    %140 = vector.load %arg5[%c64, %c0_112] : memref<72x512xf32, #tpu.memory_space<vmem>>, vector<8x512xf32>
    tpu.vector_store %arg5[%c64, %c0_112], %139 {strides = array<i32>} : memref<72x512xf32, #tpu.memory_space<vmem>>, vector<8x512xf32>,
    %c8_113 = arith.constant 8 : index
    %c0_114 = arith.constant 0 : index
    %141 = vector.load %arg2[%c8_113, %c0_114] : memref<128x128xf32, #tpu.memory_space<vmem>>, vector<8x72xf32>
    %c8_115 = arith.constant 8 : index
    %c72 = arith.constant 72 : index
    %142 = vector.load %arg2[%c8_115, %c72] : memref<128x128xf32, #tpu.memory_space<vmem>>, vector<8x1xf32>
    %c0_116 = arith.constant 0 : index
    %c0_117 = arith.constant 0 : index
    %143 = vector.load %arg5[%c0_116, %c0_117] : memref<72x512xf32, #tpu.memory_space<vmem>>, vector<72x512xf32>
    %cst_118 = arith.constant dense<0.000000e+00> : vector<8x512xf32>
    %144 = tpu.matmul %141, %143, %cst_118 {dimension_numbers = #tpu.dot_dimension_numbers<[1], [0], [0], [1], [0, 0, 1, 1], [], []>} : vector<8x72xf32>, vector<72x512xf32>, vector<8x512xf32> -> vector<8x512xf32>
    %145 = vector.broadcast %142 : vector<8x1xf32> to vector<8x512xf32>
    %146 = arith.addf %144, %145 : vector<8x512xf32>
    %cst_119 = arith.constant 0.000000e+00 : f32
    %147 = vector.broadcast %cst_119 : f32 to vector<8x512xf32>
    %148 = arith.maximumf %146, %147 : vector<8x512xf32>
    %c0_120 = arith.constant 0 : index
    %c0_121 = arith.constant 0 : index
    %149 = vector.load %arg6[%c0_120, %c0_121] : memref<8x640xf32, #tpu.memory_space<vmem>>, vector<8x512xf32>
    tpu.vector_store %arg6[%c0_120, %c0_121], %148 {strides = array<i32>} : memref<8x640xf32, #tpu.memory_space<vmem>>, vector<8x512xf32>,
    %c0_122 = arith.constant 0 : index
    %c0_123 = arith.constant 0 : index
    %150 = vector.load %arg6[%c0_122, %c0_123] : memref<8x640xf32, #tpu.memory_space<vmem>>, vector<8x512xf32>
    %c0_124 = arith.constant 0 : index
    %c2_125 = arith.constant 2 : index
    %151 = vector.load %arg6[%c0_124, %c2_125] : memref<8x640xf32, #tpu.memory_space<vmem>>, vector<8x512xf32>
    %c0_126 = arith.constant 0 : index
    %c4_127 = arith.constant 4 : index
    %152 = vector.load %arg6[%c0_126, %c4_127] : memref<8x640xf32, #tpu.memory_space<vmem>>, vector<8x512xf32>
    %c0_128 = arith.constant 0 : index
    %c6_129 = arith.constant 6 : index
    %153 = vector.load %arg6[%c0_128, %c6_129] : memref<8x640xf32, #tpu.memory_space<vmem>>, vector<8x512xf32>
    %c0_130 = arith.constant 0 : index
    %c32_131 = arith.constant 32 : index
    %154 = vector.load %arg6[%c0_130, %c32_131] : memref<8x640xf32, #tpu.memory_space<vmem>>, vector<8x512xf32>
    %c0_132 = arith.constant 0 : index
    %c34_133 = arith.constant 34 : index
    %155 = vector.load %arg6[%c0_132, %c34_133] : memref<8x640xf32, #tpu.memory_space<vmem>>, vector<8x512xf32>
    %c0_134 = arith.constant 0 : index
    %c36_135 = arith.constant 36 : index
    %156 = vector.load %arg6[%c0_134, %c36_135] : memref<8x640xf32, #tpu.memory_space<vmem>>, vector<8x512xf32>
    %c0_136 = arith.constant 0 : index
    %c38 = arith.constant 38 : index
    %157 = vector.load %arg6[%c0_136, %c38] : memref<8x640xf32, #tpu.memory_space<vmem>>, vector<8x512xf32>
    %c0_137 = arith.constant 0 : index
    %c64_138 = arith.constant 64 : index
    %158 = vector.load %arg6[%c0_137, %c64_138] : memref<8x640xf32, #tpu.memory_space<vmem>>, vector<8x512xf32>
    %c0_139 = arith.constant 0 : index
    %c66 = arith.constant 66 : index
    %159 = vector.load %arg6[%c0_139, %c66] : memref<8x640xf32, #tpu.memory_space<vmem>>, vector<8x512xf32>
    %c0_140 = arith.constant 0 : index
    %c68 = arith.constant 68 : index
    %160 = vector.load %arg6[%c0_140, %c68] : memref<8x640xf32, #tpu.memory_space<vmem>>, vector<8x512xf32>
    %c0_141 = arith.constant 0 : index
    %c70 = arith.constant 70 : index
    %161 = vector.load %arg6[%c0_141, %c70] : memref<8x640xf32, #tpu.memory_space<vmem>>, vector<8x512xf32>
    %c0_142 = arith.constant 0 : index
    %c96_143 = arith.constant 96 : index
    %162 = vector.load %arg6[%c0_142, %c96_143] : memref<8x640xf32, #tpu.memory_space<vmem>>, vector<8x512xf32>
    %c0_144 = arith.constant 0 : index
    %c98_145 = arith.constant 98 : index
    %163 = vector.load %arg6[%c0_144, %c98_145] : memref<8x640xf32, #tpu.memory_space<vmem>>, vector<8x512xf32>
    %c0_146 = arith.constant 0 : index
    %c100 = arith.constant 100 : index
    %164 = vector.load %arg6[%c0_146, %c100] : memref<8x640xf32, #tpu.memory_space<vmem>>, vector<8x512xf32>
    %c0_147 = arith.constant 0 : index
    %c102 = arith.constant 102 : index
    %165 = vector.load %arg6[%c0_147, %c102] : memref<8x640xf32, #tpu.memory_space<vmem>>, vector<8x512xf32>
    %166 = arith.maximumf %150, %151 : vector<8x512xf32>
    %167 = arith.maximumf %152, %153 : vector<8x512xf32>
    %168 = arith.maximumf %154, %155 : vector<8x512xf32>
    %169 = arith.maximumf %156, %157 : vector<8x512xf32>
    %170 = arith.maximumf %158, %159 : vector<8x512xf32>
    %171 = arith.maximumf %160, %161 : vector<8x512xf32>
    %172 = arith.maximumf %162, %163 : vector<8x512xf32>
    %173 = arith.maximumf %164, %165 : vector<8x512xf32>
    %174 = arith.maximumf %166, %167 : vector<8x512xf32>
    %175 = arith.maximumf %168, %169 : vector<8x512xf32>
    %176 = arith.maximumf %170, %171 : vector<8x512xf32>
    %177 = arith.maximumf %172, %173 : vector<8x512xf32>
    %178 = arith.maximumf %174, %175 : vector<8x512xf32>
    %179 = arith.maximumf %176, %177 : vector<8x512xf32>
    %180 = arith.maximumf %178, %179 : vector<8x512xf32>
    %181 = vector.extract_strided_slice %180 {offsets = [0, 0], sizes = [8, 128], strides = [1, 1]} : vector<8x512xf32> to vector<8x128xf32>
    %c0_148 = arith.constant 0 : index
    %c0_149 = arith.constant 0 : index
    %182 = vector.load %arg5[%c0_148, %c0_149] : memref<72x512xf32, #tpu.memory_space<vmem>>, vector<8x128xf32>
    tpu.vector_store %arg5[%c0_148, %c0_149], %181 {strides = array<i32>} : memref<72x512xf32, #tpu.memory_space<vmem>>, vector<8x128xf32>,
    %183 = vector.extract_strided_slice %180 {offsets = [0, 256], sizes = [8, 128], strides = [1, 1]} : vector<8x512xf32> to vector<8x128xf32>
    %c8_150 = arith.constant 8 : index
    %c0_151 = arith.constant 0 : index
    %184 = vector.load %arg5[%c8_150, %c0_151] : memref<72x512xf32, #tpu.memory_space<vmem>>, vector<8x128xf32>
    tpu.vector_store %arg5[%c8_150, %c0_151], %183 {strides = array<i32>} : memref<72x512xf32, #tpu.memory_space<vmem>>, vector<8x128xf32>,
    %c0_152 = arith.constant 0 : index
    %c0_153 = arith.constant 0 : index
    %185 = vector.load %arg5[%c0_152, %c0_153] : memref<72x512xf32, #tpu.memory_space<vmem>>, vector<16x128xf32>
    %186 = tpu.iota {dimensions = array<i32: 0>} : vector<128x32xi32>
    %187 = tpu.iota {dimensions = array<i32: 1>} : vector<128x32xi32>
    %c3_i32 = arith.constant 3 : i32
    %188 = vector.broadcast %c3_i32 : i32 to vector<128x32xi32>
    %189 = arith.andi %187, %188 : vector<128x32xi32>
    %c1_i32 = arith.constant 1 : i32
    %190 = vector.broadcast %c1_i32 : i32 to vector<128x32xi32>
    %191 = arith.shrsi %189, %190 : vector<128x32xi32>
    %c64_i32 = arith.constant 64 : i32
    %192 = vector.broadcast %c64_i32 : i32 to vector<128x32xi32>
    %193 = arith.muli %191, %192 : vector<128x32xi32>
    %c1_i32_154 = arith.constant 1 : i32
    %194 = vector.broadcast %c1_i32_154 : i32 to vector<128x32xi32>
    %195 = arith.andi %189, %194 : vector<128x32xi32>
    %c4_i32 = arith.constant 4 : i32
    %196 = vector.broadcast %c4_i32 : i32 to vector<128x32xi32>
    %197 = arith.muli %195, %196 : vector<128x32xi32>
    %198 = arith.addi %193, %197 : vector<128x32xi32>
    %199 = arith.cmpi eq, %186, %198 : vector<128x32xi32>
    %200 = arith.extui %199 : vector<128x32xi1> to vector<128x32xi32>
    %201 = arith.sitofp %200 : vector<128x32xi32> to vector<128x32xf32>
    %cst_155 = arith.constant dense<0.000000e+00> : vector<16x32xf32>
    %202 = tpu.matmul %185, %201, %cst_155 {dimension_numbers = #tpu.dot_dimension_numbers<[1], [0], [0], [1], [0, 0, 1, 1], [], []>} : vector<16x128xf32>, vector<128x32xf32>, vector<16x32xf32> -> vector<16x32xf32>
    %203 = tpu.iota {dimensions = array<i32: 0>} : vector<16x32xi32>
    %204 = tpu.iota {dimensions = array<i32: 1>} : vector<16x32xi32>
    %c2_i32 = arith.constant 2 : i32
    %205 = vector.broadcast %c2_i32 : i32 to vector<16x32xi32>
    %206 = arith.shrsi %204, %205 : vector<16x32xi32>
    %c7_i32 = arith.constant 7 : i32
    %207 = vector.broadcast %c7_i32 : i32 to vector<16x32xi32>
    %208 = arith.andi %203, %207 : vector<16x32xi32>
    %209 = arith.cmpi eq, %206, %208 : vector<16x32xi32>
    %210 = arith.extui %209 : vector<16x32xi1> to vector<16x32xi32>
    %211 = arith.sitofp %210 : vector<16x32xi32> to vector<16x32xf32>
    %212 = tpu.iota {dimensions = array<i32: 0>} : vector<2x16xi32>
    %213 = tpu.iota {dimensions = array<i32: 1>} : vector<2x16xi32>
    %c3_i32_156 = arith.constant 3 : i32
    %214 = vector.broadcast %c3_i32_156 : i32 to vector<2x16xi32>
    %215 = arith.shrsi %213, %214 : vector<2x16xi32>
    %216 = arith.cmpi eq, %215, %212 : vector<2x16xi32>
    %217 = arith.extui %216 : vector<2x16xi1> to vector<2x16xi32>
    %218 = arith.sitofp %217 : vector<2x16xi32> to vector<2x16xf32>
    %219 = arith.mulf %202, %211 : vector<16x32xf32>
    %cst_157 = arith.constant dense<0.000000e+00> : vector<2x32xf32>
    %220 = tpu.matmul %218, %219, %cst_157 {dimension_numbers = #tpu.dot_dimension_numbers<[1], [0], [0], [1], [0, 0, 1, 1], [], []>} : vector<2x16xf32>, vector<16x32xf32>, vector<2x32xf32> -> vector<2x32xf32>
    %c16_158 = arith.constant 16 : index
    %c0_159 = arith.constant 0 : index
    %221 = vector.load %arg2[%c16_158, %c0_159] : memref<128x128xf32, #tpu.memory_space<vmem>>, vector<32x64xf32>
    %c48_160 = arith.constant 48 : index
    %c0_161 = arith.constant 0 : index
    %222 = vector.load %arg2[%c48_160, %c0_161] : memref<128x128xf32, #tpu.memory_space<vmem>>, vector<1x64xf32>
    %c56_162 = arith.constant 56 : index
    %c0_163 = arith.constant 0 : index
    %223 = vector.load %arg2[%c56_162, %c0_163] : memref<128x128xf32, #tpu.memory_space<vmem>>, vector<64x5xf32>
    %c120 = arith.constant 120 : index
    %c0_164 = arith.constant 0 : index
    %224 = vector.load %arg2[%c120, %c0_164] : memref<128x128xf32, #tpu.memory_space<vmem>>, vector<1x5xf32>
    %cst_165 = arith.constant dense<0.000000e+00> : vector<2x64xf32>
    %225 = tpu.matmul %220, %221, %cst_165 {dimension_numbers = #tpu.dot_dimension_numbers<[1], [0], [0], [1], [0, 0, 1, 1], [], []>} : vector<2x32xf32>, vector<32x64xf32>, vector<2x64xf32> -> vector<2x64xf32>
    %226 = vector.broadcast %222 : vector<1x64xf32> to vector<2x64xf32>
    %227 = arith.addf %225, %226 : vector<2x64xf32>
    %cst_166 = arith.constant 0.000000e+00 : f32
    %228 = vector.broadcast %cst_166 : f32 to vector<2x64xf32>
    %229 = arith.maximumf %227, %228 : vector<2x64xf32>
    %cst_167 = arith.constant dense<0.000000e+00> : vector<2x5xf32>
    %230 = tpu.matmul %229, %223, %cst_167 {dimension_numbers = #tpu.dot_dimension_numbers<[1], [0], [0], [1], [0, 0, 1, 1], [], []>} : vector<2x64xf32>, vector<64x5xf32>, vector<2x5xf32> -> vector<2x5xf32>
    %231 = vector.broadcast %224 : vector<1x5xf32> to vector<2x5xf32>
    %232 = arith.addf %230, %231 : vector<2x5xf32>
    %cst_168 = arith.constant dense<0xFF800000> : vector<2xf32>
    %233 = vector.multi_reduction <maximumf>, %232, %cst_168 [1] : vector<2x5xf32> to vector<2xf32>
    %234 = vector.shape_cast %233 : vector<2xf32> to vector<2x1xf32>
    %235 = vector.broadcast %234 : vector<2x1xf32> to vector<2x5xf32>
    %236 = arith.subf %232, %235 : vector<2x5xf32>
    %237 = math.exp %236 : vector<2x5xf32>
    %cst_169 = arith.constant dense<0.000000e+00> : vector<2xf32>
    %238 = vector.multi_reduction <add>, %237, %cst_169 [1] : vector<2x5xf32> to vector<2xf32>
    %239 = vector.shape_cast %238 : vector<2xf32> to vector<2x1xf32>
    %240 = tpu.reciprocal %239 : vector<2x1xf32> -> vector<2x1xf32>
    %241 = vector.broadcast %240 : vector<2x1xf32> to vector<2x5xf32>
    %242 = arith.mulf %237, %241 : vector<2x5xf32>
    %c0_170 = arith.constant 0 : index
    %c0_171 = arith.constant 0 : index
    %243 = vector.load %arg3[%c0_170, %c0_171] : memref<2x5xf32, #tpu.memory_space<vmem>>, vector<2x5xf32>
    tpu.vector_store %arg3[%c0_170, %c0_171], %242 {strides = array<i32>} : memref<2x5xf32, #tpu.memory_space<vmem>>, vector<2x5xf32>,
    return
  }
}

</mosaic_0001>

<llo_original>
// kernel: actor_forward.1
$region0: #{actor_forward.1}
  #allocation0 [shape = 'u32[]', space=smem, size = 0x4, offset = 0x4, fixed_abs, tag = 'smem constant byte address 0x4 - core index']
  #allocation1 [shape = 'u32[144,128]{1,0:T(1,128)}', space=vmem, size = 0x12000, scoped, tag = 'internal scratch']
  #allocation2 [shape = 'f32[8,768]{1,0:T(8,128)}', space=vmem, size = 0x6000, scoped, tag = 'scratch operand']
  #allocation3 [shape = 'f32[72,512]{1,0:T(8,128)}', space=vmem, size = 0x24000, scoped, tag = 'scratch operand']
  #allocation4 [shape = 'f32[8,640]{1,0:T(8,128)}', space=vmem, size = 0x5000, scoped, tag = 'scratch operand']
  %s0 = inlined_call_operand.vmem [shape: f32[2,4,256], index: 0, kind: input, shape index: {}]
  %s1 = inlined_call_operand.hbm [shape: f32[18,512], index: 1, kind: input, shape index: {}]
  %s2 = inlined_call_operand.vmem [shape: f32[128,128], index: 2, kind: input, shape index: {}]
  %s3 = inlined_call_operand.hbm [shape: f32[2,5], index: 3, kind: output, shape index: {}]
  %s4 = sld [smem:[#allocation0]]
  $region26: #{actor_forward.1} parent=0
    _
  %s6 = ssub.s32 1, %s4
  %s7 = scalar_select 0, %s6, %s4
  $region1: #{actor_forward.1} parent=0
    #allocation5 [shape = 'u8[49152]{0}', space=vmem, size = 0xc000, scoped, tag = 'input window, operand 1, single buffered']
    #allocation6 [shape = 's32[1]{0}', space=sflag, size = 0x4, scoped, tag = 'scoped memory for actor_forward.1']
    #allocation7 [shape = 's32[1]{0}', space=sflag, size = 0x4, scoped, tag = 'scoped memory for actor_forward.1']
    #allocation8 [shape = 'u8[1024]{0}', space=vmem, size = 0x400, scoped, tag = 'output window, operand 0, single buffered']
    %8 = vsyncpa [#allocation6], 0
    %9 = vsyncpa [#allocation7], 0
    // Predicated region
    $region2: #{actor_forward.1} parent=1 // pred_check
      _
    $region3: #{actor_forward.1} parent=1 // pred_check_branch
      %11 = sbr.rel (0) target = $region5
    $region4: #{actor_forward.1} parent=1 // pred_region
      _
    $region5: #{actor_forward.1} parent=1 // pred_fallthru
      _
    // Predicated region
    $region6: #{actor_forward.1} parent=1 // pred_check
      _
    $region7: #{actor_forward.1} parent=1 // pred_check_branch
      %13 = sbr.rel (0) target = $region9
    $region8: #{actor_forward.1} parent=1 // pred_region
      %s15 = ssub.s32 1536, 1536
      %16 = vsyncadd [#allocation6], %s15
      %s17 = sshll.u32 [#allocation5], 4
      %s18 = int_to_ptr.vmem [resolvable:$true] %s17
      %23 = dma.hbm_to_vmem [thread:$0]  %s1, 1536, %s18, [#allocation6], 512, 512, 32
    $region9: #{actor_forward.1} parent=1 // pred_fallthru
      _
    // Predicated region
    $region10: #{actor_forward.1} parent=1 // pred_check
      _
    $region11: #{actor_forward.1} parent=1 // pred_check_branch
      %25 = sbr.rel (0) target = $region13
    $region12: #{actor_forward.1} parent=1 // pred_region
      _
    $region13: #{actor_forward.1} parent=1 // pred_fallthru
      _
    // Predicated region
    $region14: #{actor_forward.1} parent=1 // pred_check
      _
    $region15: #{actor_forward.1} parent=1 // pred_check_branch
      %27 = sbr.rel (0) target = $region17
    $region16: #{actor_forward.1} parent=1 // pred_region
      %28 = dma.done [#allocation6], 1536
    $region17: #{actor_forward.1} parent=1 // pred_fallthru
      _
    %29 = vst [vmem:[#allocation2] sm:$0xff] 0.0
    %30 = vst [vmem:[#allocation2 + $0x28] sm:$0xff] 0.0
    %31 = vst [vmem:[#allocation4 + $0x20] sm:$0xff] 0.0
    %v32 = vld [vmem:[%s0] sm:$0xff]
    %v34 = vcombine.high %v32, %v32
    %36 = vst [vmem:[#allocation2 + $0x8] sm:$0xf] %v32
    %37 = vst [vmem:[#allocation2 + $0x10] sm:$0xf] %v34
    %s38 = scalar_lea.vmem %s0, 8
    %v39 = vld [vmem:[%s38] sm:$0xff]
    %v41 = vcombine.high %v39, %v39
    %43 = vst [vmem:[#allocation2 + $0x18] sm:$0xf] %v39
    %44 = vst [vmem:[#allocation2 + $0x20] sm:$0xf] %v41
    %v45 = vld [vmem:[#allocation2] sm:$0xf]
    %v46 = vld [vmem:[#allocation2 + $0x8] sm:$0xf]
    %v47 = vld [vmem:[#allocation2 + $0x10] sm:$0xf]
    %v48 = vld [vmem:[#allocation2 + $0x18] sm:$0xf]
    %v49 = vld [vmem:[#allocation2 + $0x20] sm:$0xf]
    %v50 = vld [vmem:[#allocation5] ss:$8 sm:$0xf]
    %v52 = vlaneseq
    %v53 = vshrl.u32 %v52, 7
    %v54 = vsub.s32 0, %v53
    %v55 = vrot.slane %v50, %v54
    %v56 = vlaneseq
    %v57 = vshrl.u32 %v56, 7
    %v58 = vsub.s32 1, %v57
    %v59 = vrot.slane %v50, %v58
    %v60 = vlaneseq
    %v61 = vshrl.u32 %v60, 7
    %v62 = vsub.s32 2, %v61
    %v63 = vrot.slane %v50, %v62
    %v64 = vlaneseq
    %v65 = vshrl.u32 %v64, 7
    %v66 = vsub.s32 3, %v65
    %v67 = vrot.slane %v50, %v66
    %68 = vrot.lane.b32.xlu0 %v55, 111
    %v69 = vpop.permute.xlu0 %68
    %70 = vrot.lane.b32.xlu0 %v59, 111
    %v71 = vpop.permute.xlu0 %70
    %72 = vrot.lane.b32.xlu0 %v63, 111
    %v73 = vpop.permute.xlu0 %72
    %74 = vrot.lane.b32.xlu0 %v67, 111
    %v75 = vpop.permute.xlu0 %74
    %vm76 = vcmask 908288
    %v77 = vsel %vm76, %v69, %v71
    %v78 = vsel %vm76, %v71, %v73
    %v79 = vsel %vm76, %v73, %v75
    %v85 = vmul.f32 %v45, %v69
    %v86 = vmul.f32 %v46, %v77
    %v87 = vmul.f32 %v47, %v78
    %v88 = vmul.f32 %v48, %v79
    %v89 = vmul.f32 %v49, %v75
    %95 = vrot.lane.b32.xlu0 %v85, 17
    %v96 = vpop.permute.xlu0 %95
    %97 = vrot.lane.b32.xlu0 %v86, 17
    %v98 = vpop.permute.xlu0 %97
    %99 = vrot.lane.b32.xlu0 %v87, 17
    %v100 = vpop.permute.xlu0 %99
    %101 = vrot.lane.b32.xlu0 %v88, 17
    %v102 = vpop.permute.xlu0 %101
    %103 = vrot.lane.b32.xlu0 %v89, 17
    %v104 = vpop.permute.xlu0 %103
    %vm105 = vcmask 138240
    %v106 = vsel %vm105, %v96, %v98
    %v107 = vsel %vm105, %v98, %v100
    %v108 = vsel %vm105, %v100, %v102
    %v109 = vsel %vm105, %v102, %v104
    %114 = vst [vmem:[#allocation3] sm:$0xf] %v106
    %115 = vst [vmem:[#allocation3 + $0x8] sm:$0xf] %v107
    %116 = vst [vmem:[#allocation3 + $0x10] sm:$0xf] %v108
    %117 = vst [vmem:[#allocation3 + $0x18] sm:$0xf] %v109
    %v118 = vld [vmem:[#allocation2] sm:$0xf]
    %v119 = vld [vmem:[#allocation2 + $0x8] sm:$0xf]
    %v120 = vld [vmem:[#allocation2 + $0x10] sm:$0xf]
    %v121 = vld [vmem:[#allocation2 + $0x18] sm:$0xf]
    %v122 = vld [vmem:[#allocation2 + $0x20] sm:$0xf]
    %s123 = scalar_lea.vmem [#allocation5], 1
    %v124 = vld [vmem:[%s123] ss:$8 sm:$0xf]
    %v126 = vlaneseq
    %v127 = vshrl.u32 %v126, 7
    %v128 = vsub.s32 0, %v127
    %v129 = vrot.slane %v124, %v128
    %v130 = vlaneseq
    %v131 = vshrl.u32 %v130, 7
    %v132 = vsub.s32 1, %v131
    %v133 = vrot.slane %v124, %v132
    %v134 = vlaneseq
    %v135 = vshrl.u32 %v134, 7
    %v136 = vsub.s32 2, %v135
    %v137 = vrot.slane %v124, %v136
    %v138 = vlaneseq
    %v139 = vshrl.u32 %v138, 7
    %v140 = vsub.s32 3, %v139
    %v141 = vrot.slane %v124, %v140
    %142 = vrot.lane.b32.xlu0 %v129, 112
    %v143 = vpop.permute.xlu0 %142
    %144 = vrot.lane.b32.xlu0 %v133, 112
    %v145 = vpop.permute.xlu0 %144
    %146 = vrot.lane.b32.xlu0 %v137, 112
    %v147 = vpop.permute.xlu0 %146
    %148 = vrot.lane.b32.xlu0 %v141, 112
    %v149 = vpop.permute.xlu0 %148
    %vm150 = vcmask 916480
    %v151 = vsel %vm150, %v143, %v145
    %v152 = vsel %vm150, %v145, %v147
    %v153 = vsel %vm150, %v147, %v149
    %v159 = vmul.f32 %v118, %v143
    %v160 = vmul.f32 %v119, %v151
    %v161 = vmul.f32 %v120, %v152
    %v162 = vmul.f32 %v121, %v153
    %v163 = vmul.f32 %v122, %v149
    %v169 = vrot.slane %v159, 4
    %v170 = vrot.slane %v160, 4
    %v171 = vrot.slane %v161, 4
    %v172 = vrot.slane %v162, 4
    %v173 = vrot.slane %v163, 4
    %174 = vrot.lane.b32.xlu0 %v169, 16
    %v175 = vpop.permute.xlu0 %174
    %176 = vrot.lane.b32.xlu0 %v170, 16
    %v177 = vpop.permute.xlu0 %176
    %178 = vrot.lane.b32.xlu0 %v171, 16
    %v179 = vpop.permute.xlu0 %178
    %180 = vrot.lane.b32.xlu0 %v172, 16
    %v181 = vpop.permute.xlu0 %180
    %182 = vrot.lane.b32.xlu0 %v173, 16
    %v183 = vpop.permute.xlu0 %182
    %vm184 = vcmask 130048
    %v185 = vsel %vm184, %v175, %v177
    %v186 = vsel %vm184, %v177, %v179
    %v187 = vsel %vm184, %v179, %v181
    %v188 = vsel %vm184, %v181, %v183
    %193 = vst [vmem:[#allocation3] sm:$0xf0] %v185
    %194 = vst [vmem:[#allocation3 + $0x8] sm:$0xf0] %v186
    %195 = vst [vmem:[#allocation3 + $0x10] sm:$0xf0] %v187
    %196 = vst [vmem:[#allocation3 + $0x18] sm:$0xf0] %v188
    %v197 = vld [vmem:[#allocation2] sm:$0xf]
    %v198 = vld [vmem:[#allocation2 + $0x8] sm:$0xf]
    %v199 = vld [vmem:[#allocation2 + $0x10] sm:$0xf]
    %v200 = vld [vmem:[#allocation2 + $0x18] sm:$0xf]
    %v201 = vld [vmem:[#allocation2 + $0x20] sm:$0xf]
    %s202 = scalar_lea.vmem [#allocation5], 2
    %v203 = vld [vmem:[%s202] ss:$8 sm:$0xf]
    %v205 = vlaneseq
    %v206 = vshrl.u32 %v205, 7
    %v207 = vsub.s32 0, %v206
    %v208 = vrot.slane %v203, %v207
    %v209 = vlaneseq
    %v210 = vshrl.u32 %v209, 7
    %v211 = vsub.s32 1, %v210
    %v212 = vrot.slane %v203, %v211
    %v213 = vlaneseq
    %v214 = vshrl.u32 %v213, 7
    %v215 = vsub.s32 2, %v214
    %v216 = vrot.slane %v203, %v215
    %v217 = vlaneseq
    %v218 = vshrl.u32 %v217, 7
    %v219 = vsub.s32 3, %v218
    %v220 = vrot.slane %v203, %v219
    %221 = vrot.lane.b32.xlu0 %v208, 113
    %v222 = vpop.permute.xlu0 %221
    %223 = vrot.lane.b32.xlu0 %v212, 113
    %v224 = vpop.permute.xlu0 %223
    %225 = vrot.lane.b32.xlu0 %v216, 113
    %v226 = vpop.permute.xlu0 %225
    %227 = vrot.lane.b32.xlu0 %v220, 113
    %v228 = vpop.permute.xlu0 %227
    %vm229 = vcmask 924672
    %v230 = vsel %vm229, %v222, %v224
    %v231 = vsel %vm229, %v224, %v226
    %v232 = vsel %vm229, %v226, %v228
    %v238 = vmul.f32 %v197, %v222
    %v239 = vmul.f32 %v198, %v230
    %v240 = vmul.f32 %v199, %v231
    %v241 = vmul.f32 %v200, %v232
    %v242 = vmul.f32 %v201, %v228
    %248 = vrot.lane.b32.xlu0 %v238, 15
    %v249 = vpop.permute.xlu0 %248
    %250 = vrot.lane.b32.xlu0 %v239, 15
    %v251 = vpop.permute.xlu0 %250
    %252 = vrot.lane.b32.xlu0 %v240, 15
    %v253 = vpop.permute.xlu0 %252
    %254 = vrot.lane.b32.xlu0 %v241, 15
    %v255 = vpop.permute.xlu0 %254
    %256 = vrot.lane.b32.xlu0 %v242, 15
    %v257 = vpop.permute.xlu0 %256
    %vm258 = vcmask 121856
    %v259 = vsel %vm258, %v249, %v251
    %v260 = vsel %vm258, %v251, %v253
    %v261 = vsel %vm258, %v253, %v255
    %v262 = vsel %vm258, %v255, %v257
    %267 = vst [vmem:[#allocation3 + $0x20] sm:$0xf] %v259
    %268 = vst [vmem:[#allocation3 + $0x28] sm:$0xf] %v260
    %269 = vst [vmem:[#allocation3 + $0x30] sm:$0xf] %v261
    %270 = vst [vmem:[#allocation3 + $0x38] sm:$0xf] %v262
    %v271 = vld [vmem:[#allocation2] sm:$0xf]
    %v272 = vld [vmem:[#allocation2 + $0x8] sm:$0xf]
    %v273 = vld [vmem:[#allocation2 + $0x10] sm:$0xf]
    %v274 = vld [vmem:[#allocation2 + $0x18] sm:$0xf]
    %v275 = vld [vmem:[#allocation2 + $0x20] sm:$0xf]
    %s276 = scalar_lea.vmem [#allocation5], 3
    %v277 = vld [vmem:[%s276] ss:$8 sm:$0xf]
    %v279 = vlaneseq
    %v280 = vshrl.u32 %v279, 7
    %v281 = vsub.s32 0, %v280
    %v282 = vrot.slane %v277, %v281
    %v283 = vlaneseq
    %v284 = vshrl.u32 %v283, 7
    %v285 = vsub.s32 1, %v284
    %v286 = vrot.slane %v277, %v285
    %v287 = vlaneseq
    %v288 = vshrl.u32 %v287, 7
    %v289 = vsub.s32 2, %v288
    %v290 = vrot.slane %v277, %v289
    %v291 = vlaneseq
    %v292 = vshrl.u32 %v291, 7
    %v293 = vsub.s32 3, %v292
    %v294 = vrot.slane %v277, %v293
    %295 = vrot.lane.b32.xlu0 %v282, 127
    %v296 = vpop.permute.xlu0 %295
    %297 = vrot.lane.b32.xlu0 %v286, 127
    %v298 = vpop.permute.xlu0 %297
    %299 = vrot.lane.b32.xlu0 %v290, 127
    %v300 = vpop.permute.xlu0 %299
    %301 = vrot.lane.b32.xlu0 %v294, 127
    %v302 = vpop.permute.xlu0 %301
    %vm303 = vcmask 1039360
    %v304 = vsel %vm303, %v296, %v298
    %v305 = vsel %vm303, %v298, %v300
    %v306 = vsel %vm303, %v300, %v302
    %v312 = vmul.f32 %v271, %v296
    %v313 = vmul.f32 %v272, %v304
    %v314 = vmul.f32 %v273, %v305
    %v315 = vmul.f32 %v274, %v306
    %v316 = vmul.f32 %v275, %v302
    %v322 = vrot.slane %v312, 4
    %v323 = vrot.slane %v313, 4
    %v324 = vrot.slane %v314, 4
    %v325 = vrot.slane %v315, 4
    %v326 = vrot.slane %v316, 4
    %327 = vrot.lane.b32.xlu0 %v322, 1
    %v328 = vpop.permute.xlu0 %327
    %329 = vrot.lane.b32.xlu0 %v323, 1
    %v330 = vpop.permute.xlu0 %329
    %331 = vrot.lane.b32.xlu0 %v324, 1
    %v332 = vpop.permute.xlu0 %331
    %333 = vrot.lane.b32.xlu0 %v325, 1
    %v334 = vpop.permute.xlu0 %333
    %335 = vrot.lane.b32.xlu0 %v326, 1
    %v336 = vpop.permute.xlu0 %335
    %vm337 = vcmask 7168
    %v338 = vsel %vm337, %v328, %v330
    %v339 = vsel %vm337, %v330, %v332
    %v340 = vsel %vm337, %v332, %v334
    %v341 = vsel %vm337, %v334, %v336
    %346 = vst [vmem:[#allocation3 + $0x20] sm:$0xf0] %v338
    %347 = vst [vmem:[#allocation3 + $0x28] sm:$0xf0] %v339
    %348 = vst [vmem:[#allocation3 + $0x30] sm:$0xf0] %v340
    %349 = vst [vmem:[#allocation3 + $0x38] sm:$0xf0] %v341
    %v350 = vld [vmem:[#allocation2 + $0x8] sm:$0xf]
    %v351 = vld [vmem:[#allocation2 + $0x10] sm:$0xf]
    %v352 = vld [vmem:[#allocation2 + $0x18] sm:$0xf]
    %v353 = vld [vmem:[#allocation2 + $0x20] sm:$0xf]
    %s354 = scalar_lea.vmem [#allocation5], 4
    %v355 = vld [vmem:[%s354] ss:$8 sm:$0xf]
    %v357 = vlaneseq
    %v358 = vshrl.u32 %v357, 7
    %v359 = vsub.s32 0, %v358
    %v360 = vrot.slane %v355, %v359
    %v361 = vlaneseq
    %v362 = vshrl.u32 %v361, 7
    %v363 = vsub.s32 1, %v362
    %v364 = vrot.slane %v355, %v363
    %v365 = vlaneseq
    %v366 = vshrl.u32 %v365, 7
    %v367 = vsub.s32 2, %v366
    %v368 = vrot.slane %v355, %v367
    %v369 = vlaneseq
    %v370 = vshrl.u32 %v369, 7
    %v371 = vsub.s32 3, %v370
    %v372 = vrot.slane %v355, %v371
    %v377 = vmul.f32 %v350, %v360
    %v378 = vmul.f32 %v351, %v364
    %v379 = vmul.f32 %v352, %v368
    %v380 = vmul.f32 %v353, %v372
    %381 = vst [vmem:[#allocation3 + $0x40] sm:$0xf] %v377
    %382 = vst [vmem:[#allocation3 + $0x48] sm:$0xf] %v378
    %383 = vst [vmem:[#allocation3 + $0x50] sm:$0xf] %v379
    %384 = vst [vmem:[#allocation3 + $0x58] sm:$0xf] %v380
    %v385 = vld [vmem:[#allocation2 + $0x8] sm:$0xf]
    %v386 = vld [vmem:[#allocation2 + $0x10] sm:$0xf]
    %v387 = vld [vmem:[#allocation2 + $0x18] sm:$0xf]
    %v388 = vld [vmem:[#allocation2 + $0x20] sm:$0xf]
    %v389 = vld [vmem:[#allocation2 + $0x28] sm:$0xf]
    %s390 = scalar_lea.vmem [#allocation5], 5
    %v391 = vld [vmem:[%s390] ss:$8 sm:$0xf]
    %v393 = vlaneseq
    %v394 = vshrl.u32 %v393, 7
    %v395 = vsub.s32 0, %v394
    %v396 = vrot.slane %v391, %v395
    %v397 = vlaneseq
    %v398 = vshrl.u32 %v397, 7
    %v399 = vsub.s32 1, %v398
    %v400 = vrot.slane %v391, %v399
    %v401 = vlaneseq
    %v402 = vshrl.u32 %v401, 7
    %v403 = vsub.s32 2, %v402
    %v404 = vrot.slane %v391, %v403
    %v405 = vlaneseq
    %v406 = vshrl.u32 %v405, 7
    %v407 = vsub.s32 3, %v406
    %v408 = vrot.slane %v391, %v407
    %409 = vrot.lane.b32.xlu0 %v396, 1
    %v410 = vpop.permute.xlu0 %409
    %411 = vrot.lane.b32.xlu0 %v400, 1
    %v412 = vpop.permute.xlu0 %411
    %413 = vrot.lane.b32.xlu0 %v404, 1
    %v414 = vpop.permute.xlu0 %413
    %415 = vrot.lane.b32.xlu0 %v408, 1
    %v416 = vpop.permute.xlu0 %415
    %v417 = vsel %vm337, %v410, %v412
    %v418 = vsel %vm337, %v412, %v414
    %v419 = vsel %vm337, %v414, %v416
    %v425 = vmul.f32 %v385, %v410
    %v426 = vmul.f32 %v386, %v417
    %v427 = vmul.f32 %v387, %v418
    %v428 = vmul.f32 %v388, %v419
    %v429 = vmul.f32 %v389, %v416
    %v435 = vrot.slane %v425, 4
    %v436 = vrot.slane %v426, 4
    %v437 = vrot.slane %v427, 4
    %v438 = vrot.slane %v428, 4
    %v439 = vrot.slane %v429, 4
    %440 = vrot.lane.b32.xlu0 %v435, 127
    %v441 = vpop.permute.xlu0 %440
    %442 = vrot.lane.b32.xlu0 %v436, 127
    %v443 = vpop.permute.xlu0 %442
    %444 = vrot.lane.b32.xlu0 %v437, 127
    %v445 = vpop.permute.xlu0 %444
    %446 = vrot.lane.b32.xlu0 %v438, 127
    %v447 = vpop.permute.xlu0 %446
    %448 = vrot.lane.b32.xlu0 %v439, 127
    %v449 = vpop.permute.xlu0 %448
    %v450 = vsel %vm303, %v441, %v443
    %v451 = vsel %vm303, %v443, %v445
    %v452 = vsel %vm303, %v445, %v447
    %v453 = vsel %vm303, %v447, %v449
    %458 = vst [vmem:[#allocation3 + $0x40] sm:$0xf0] %v450
    %459 = vst [vmem:[#allocation3 + $0x48] sm:$0xf0] %v451
    %460 = vst [vmem:[#allocation3 + $0x50] sm:$0xf0] %v452
    %461 = vst [vmem:[#allocation3 + $0x58] sm:$0xf0] %v453
    %v462 = vld [vmem:[#allocation2 + $0x8] sm:$0xf]
    %v463 = vld [vmem:[#allocation2 + $0x10] sm:$0xf]
    %v464 = vld [vmem:[#allocation2 + $0x18] sm:$0xf]
    %v465 = vld [vmem:[#allocation2 + $0x20] sm:$0xf]
    %v466 = vld [vmem:[#allocation2 + $0x28] sm:$0xf]
    %s467 = scalar_lea.vmem [#allocation5], 6
    %v468 = vld [vmem:[%s467] ss:$8 sm:$0xf]
    %v470 = vlaneseq
    %v471 = vshrl.u32 %v470, 7
    %v472 = vsub.s32 0, %v471
    %v473 = vrot.slane %v468, %v472
    %v474 = vlaneseq
    %v475 = vshrl.u32 %v474, 7
    %v476 = vsub.s32 1, %v475
    %v477 = vrot.slane %v468, %v476
    %v478 = vlaneseq
    %v479 = vshrl.u32 %v478, 7
    %v480 = vsub.s32 2, %v479
    %v481 = vrot.slane %v468, %v480
    %v482 = vlaneseq
    %v483 = vshrl.u32 %v482, 7
    %v484 = vsub.s32 3, %v483
    %v485 = vrot.slane %v468, %v484
    %486 = vrot.lane.b32.xlu0 %v473, 15
    %v487 = vpop.permute.xlu0 %486
    %488 = vrot.lane.b32.xlu0 %v477, 15
    %v489 = vpop.permute.xlu0 %488
    %490 = vrot.lane.b32.xlu0 %v481, 15
    %v491 = vpop.permute.xlu0 %490
    %492 = vrot.lane.b32.xlu0 %v485, 15
    %v493 = vpop.permute.xlu0 %492
    %v494 = vsel %vm258, %v487, %v489
    %v495 = vsel %vm258, %v489, %v491
    %v496 = vsel %vm258, %v491, %v493
    %v502 = vmul.f32 %v462, %v487
    %v503 = vmul.f32 %v463, %v494
    %v504 = vmul.f32 %v464, %v495
    %v505 = vmul.f32 %v465, %v496
    %v506 = vmul.f32 %v466, %v493
    %512 = vrot.lane.b32.xlu0 %v502, 113
    %v513 = vpop.permute.xlu0 %512
    %514 = vrot.lane.b32.xlu0 %v503, 113
    %v515 = vpop.permute.xlu0 %514
    %516 = vrot.lane.b32.xlu0 %v504, 113
    %v517 = vpop.permute.xlu0 %516
    %518 = vrot.lane.b32.xlu0 %v505, 113
    %v519 = vpop.permute.xlu0 %518
    %520 = vrot.lane.b32.xlu0 %v506, 113
    %v521 = vpop.permute.xlu0 %520
    %v522 = vsel %vm229, %v513, %v515
    %v523 = vsel %vm229, %v515, %v517
    %v524 = vsel %vm229, %v517, %v519
    %v525 = vsel %vm229, %v519, %v521
    %530 = vst [vmem:[#allocation3 + $0x60] sm:$0xf] %v522
    %531 = vst [vmem:[#allocation3 + $0x68] sm:$0xf] %v523
    %532 = vst [vmem:[#allocation3 + $0x70] sm:$0xf] %v524
    %533 = vst [vmem:[#allocation3 + $0x78] sm:$0xf] %v525
    %v534 = vld [vmem:[#allocation2 + $0x8] sm:$0xf]
    %v535 = vld [vmem:[#allocation2 + $0x10] sm:$0xf]
    %v536 = vld [vmem:[#allocation2 + $0x18] sm:$0xf]
    %v537 = vld [vmem:[#allocation2 + $0x20] sm:$0xf]
    %v538 = vld [vmem:[#allocation2 + $0x28] sm:$0xf]
    %s539 = scalar_lea.vmem [#allocation5], 7
    %v540 = vld [vmem:[%s539] ss:$8 sm:$0xf]
    %v542 = vlaneseq
    %v543 = vshrl.u32 %v542, 7
    %v544 = vsub.s32 0, %v543
    %v545 = vrot.slane %v540, %v544
    %v546 = vlaneseq
    %v547 = vshrl.u32 %v546, 7
    %v548 = vsub.s32 1, %v547
    %v549 = vrot.slane %v540, %v548
    %v550 = vlaneseq
    %v551 = vshrl.u32 %v550, 7
    %v552 = vsub.s32 2, %v551
    %v553 = vrot.slane %v540, %v552
    %v554 = vlaneseq
    %v555 = vshrl.u32 %v554, 7
    %v556 = vsub.s32 3, %v555
    %v557 = vrot.slane %v540, %v556
    %558 = vrot.lane.b32.xlu0 %v545, 16
    %v559 = vpop.permute.xlu0 %558
    %560 = vrot.lane.b32.xlu0 %v549, 16
    %v561 = vpop.permute.xlu0 %560
    %562 = vrot.lane.b32.xlu0 %v553, 16
    %v563 = vpop.permute.xlu0 %562
    %564 = vrot.lane.b32.xlu0 %v557, 16
    %v565 = vpop.permute.xlu0 %564
    %v566 = vsel %vm184, %v559, %v561
    %v567 = vsel %vm184, %v561, %v563
    %v568 = vsel %vm184, %v563, %v565
    %v574 = vmul.f32 %v534, %v559
    %v575 = vmul.f32 %v535, %v566
    %v576 = vmul.f32 %v536, %v567
    %v577 = vmul.f32 %v537, %v568
    %v578 = vmul.f32 %v538, %v565
    %v584 = vrot.slane %v574, 4
    %v585 = vrot.slane %v575, 4
    %v586 = vrot.slane %v576, 4
    %v587 = vrot.slane %v577, 4
    %v588 = vrot.slane %v578, 4
    %589 = vrot.lane.b32.xlu0 %v584, 112
    %v590 = vpop.permute.xlu0 %589
    %591 = vrot.lane.b32.xlu0 %v585, 112
    %v592 = vpop.permute.xlu0 %591
    %593 = vrot.lane.b32.xlu0 %v586, 112
    %v594 = vpop.permute.xlu0 %593
    %595 = vrot.lane.b32.xlu0 %v587, 112
    %v596 = vpop.permute.xlu0 %595
    %597 = vrot.lane.b32.xlu0 %v588, 112
    %v598 = vpop.permute.xlu0 %597
    %v599 = vsel %vm150, %v590, %v592
    %v600 = vsel %vm150, %v592, %v594
    %v601 = vsel %vm150, %v594, %v596
    %v602 = vsel %vm150, %v596, %v598
    %607 = vst [vmem:[#allocation3 + $0x60] sm:$0xf0] %v599
    %608 = vst [vmem:[#allocation3 + $0x68] sm:$0xf0] %v600
    %609 = vst [vmem:[#allocation3 + $0x70] sm:$0xf0] %v601
    %610 = vst [vmem:[#allocation3 + $0x78] sm:$0xf0] %v602
    %v611 = vld [vmem:[#allocation2 + $0x8] sm:$0xf]
    %v612 = vld [vmem:[#allocation2 + $0x10] sm:$0xf]
    %v613 = vld [vmem:[#allocation2 + $0x18] sm:$0xf]
    %v614 = vld [vmem:[#allocation2 + $0x20] sm:$0xf]
    %v615 = vld [vmem:[#allocation2 + $0x28] sm:$0xf]
    %s616 = scalar_lea.vmem [#allocation5], 32
    %v617 = vld [vmem:[%s616] ss:$8 sm:$0xf]
    %v619 = vlaneseq
    %v620 = vshrl.u32 %v619, 7
    %v621 = vsub.s32 0, %v620
    %v622 = vrot.slane %v617, %v621
    %v623 = vlaneseq
    %v624 = vshrl.u32 %v623, 7
    %v625 = vsub.s32 1, %v624
    %v626 = vrot.slane %v617, %v625
    %v627 = vlaneseq
    %v628 = vshrl.u32 %v627, 7
    %v629 = vsub.s32 2, %v628
    %v630 = vrot.slane %v617, %v629
    %v631 = vlaneseq
    %v632 = vshrl.u32 %v631, 7
    %v633 = vsub.s32 3, %v632
    %v634 = vrot.slane %v617, %v633
    %635 = vrot.lane.b32.xlu0 %v622, 17
    %v636 = vpop.permute.xlu0 %635
    %637 = vrot.lane.b32.xlu0 %v626, 17
    %v638 = vpop.permute.xlu0 %637
    %639 = vrot.lane.b32.xlu0 %v630, 17
    %v640 = vpop.permute.xlu0 %639
    %641 = vrot.lane.b32.xlu0 %v634, 17
    %v642 = vpop.permute.xlu0 %641
    %v643 = vsel %vm105, %v636, %v638
    %v644 = vsel %vm105, %v638, %v640
    %v645 = vsel %vm105, %v640, %v642
    %v651 = vmul.f32 %v611, %v636
    %v652 = vmul.f32 %v612, %v643
    %v653 = vmul.f32 %v613, %v644
    %v654 = vmul.f32 %v614, %v645
    %v655 = vmul.f32 %v615, %v642
    %661 = vrot.lane.b32.xlu0 %v651, 111
    %v662 = vpop.permute.xlu0 %661
    %663 = vrot.lane.b32.xlu0 %v652, 111
    %v664 = vpop.permute.xlu0 %663
    %665 = vrot.lane.b32.xlu0 %v653, 111
    %v666 = vpop.permute.xlu0 %665
    %667 = vrot.lane.b32.xlu0 %v654, 111
    %v668 = vpop.permute.xlu0 %667
    %669 = vrot.lane.b32.xlu0 %v655, 111
    %v670 = vpop.permute.xlu0 %669
    %v671 = vsel %vm76, %v662, %v664
    %v672 = vsel %vm76, %v664, %v666
    %v673 = vsel %vm76, %v666, %v668
    %v674 = vsel %vm76, %v668, %v670
    %679 = vst [vmem:[#allocation3 + $0x80] sm:$0xf] %v671
    %680 = vst [vmem:[#allocation3 + $0x88] sm:$0xf] %v672
    %681 = vst [vmem:[#allocation3 + $0x90] sm:$0xf] %v673
    %682 = vst [vmem:[#allocation3 + $0x98] sm:$0xf] %v674
    %v683 = vld [vmem:[%s2] sm:$0xff]
    %v684 = vld [vmem:[#allocation3] sm:$0xff]
    %v685 = vld [vmem:[#allocation3 + $0x8] sm:$0xff]
    %v686 = vld [vmem:[#allocation3 + $0x10] sm:$0xff]
    %v687 = vld [vmem:[#allocation3 + $0x18] sm:$0xff]
    %v688 = vld [vmem:[#allocation3 + $0x20] sm:$0xff]
    %v689 = vld [vmem:[#allocation3 + $0x28] sm:$0xff]
    %v690 = vld [vmem:[#allocation3 + $0x30] sm:$0xff]
    %v691 = vld [vmem:[#allocation3 + $0x38] sm:$0xff]
    %v692 = vld [vmem:[#allocation3 + $0x40] sm:$0xff]
    %v693 = vld [vmem:[#allocation3 + $0x48] sm:$0xff]
    %v694 = vld [vmem:[#allocation3 + $0x50] sm:$0xff]
    %v695 = vld [vmem:[#allocation3 + $0x58] sm:$0xff]
    %v696 = vld [vmem:[#allocation3 + $0x60] sm:$0xff]
    %v697 = vld [vmem:[#allocation3 + $0x68] sm:$0xff]
    %v698 = vld [vmem:[#allocation3 + $0x70] sm:$0xff]
    %v699 = vld [vmem:[#allocation3 + $0x78] sm:$0xff]
    %v700 = vld [vmem:[#allocation3 + $0x80] sm:$0xf]
    %v701 = vld [vmem:[#allocation3 + $0x88] sm:$0xf]
    %v702 = vld [vmem:[#allocation3 + $0x90] sm:$0xf]
    %v703 = vld [vmem:[#allocation3 + $0x98] sm:$0xf]
    %705 = vset.pattern.permute.xlu0 36
    %706 = vperm.xlu0 %705, %v683
    %v707 = vpop.permute.xlu0 %706
    %vm709 = vcmask 293888
    %v710 = vsel %vm709, %v683, 0
    %vm712 = vcmask 1043456
    %v714 = vsel %vm712, %v700, 0
    %v717 = vsel %vm712, %v701, 0
    %v720 = vsel %vm712, %v702, 0
    %v723 = vsel %vm712, %v703, 0
    %725 = vmatprep.subr.mxu0 0.0
    %726 = vmatpush1.msra.mxu0 0.0
    %727 = vmatprep.subr.mxu0 0.0
    %728 = vmatpush1.msra.mxu0 0.0
    %729 = vmatprep.subr.mxu0 0.0
    %730 = vmatpush1.msra.mxu0 0.0
    %731 = vmatprep.subr.mxu0 0.0
    %732 = vmatpush1.msra.mxu0 0.0
    %733 = vmatprep.subr.mxu0 0.0
    %734 = vmatpush1.msra.mxu0 0.0
    %735 = vmatprep.subr.mxu0 0.0
    %736 = vmatpush1.msra.mxu0 0.0
    %737 = vmatprep.subr.mxu0 0.0
    %738 = vmatpush1.msra.mxu0 0.0
    %739 = vmatprep.subr.mxu0 0.0
    %740 = vmatpush1.msra.mxu0 0.0
    %741 = vmatprep.subr.mxu0 0.0
    %742 = vmatpush1.msra.mxu0 0.0
    %743 = vmatprep.subr.mxu0 0.0
    %744 = vmatpush1.msra.mxu0 0.0
    %745 = vmatprep.subr.mxu0 0.0
    %746 = vmatpush1.msra.mxu0 0.0
    %747 = vmatprep.subr.mxu0 %v717
    %748 = vmatpush1.msra.mxu0 %v714
    %749 = vmatprep.subr.mxu0 %v697
    %750 = vmatpush1.msra.mxu0 %v696
    %751 = vmatprep.subr.mxu0 %v693
    %752 = vmatpush1.msra.mxu0 %v692
    %753 = vmatprep.subr.mxu0 %v689
    %754 = vmatpush1.msra.mxu0 %v688
    %755 = vmatprep.subr.mxu0 %v685
    %756 = vmatpush1.msra.mxu0 %v684
    %757 = vmatprep.subr.mxu0 0.0
    %758 = vmatpush2.msra.mxu0 0.0
    %759 = vmatprep.subr.mxu0 0.0
    %760 = vmatpush2.msra.mxu0 0.0
    %761 = vmatprep.subr.mxu0 0.0
    %762 = vmatpush2.msra.mxu0 0.0
    %763 = vmatprep.subr.mxu0 0.0
    %764 = vmatpush2.msra.mxu0 0.0
    %765 = vmatprep.subr.mxu0 0.0
    %766 = vmatpush2.msra.mxu0 0.0
    %767 = vmatprep.subr.mxu0 0.0
    %768 = vmatpush2.msra.mxu0 0.0
    %769 = vmatprep.subr.mxu0 0.0
    %770 = vmatpush2.msra.mxu0 0.0
    %771 = vmatprep.subr.mxu0 0.0
    %772 = vmatpush2.msra.mxu0 0.0
    %773 = vmatprep.subr.mxu0 0.0
    %774 = vmatpush2.msra.mxu0 0.0
    %775 = vmatprep.subr.mxu0 0.0
    %776 = vmatpush2.msra.mxu0 0.0
    %777 = vmatprep.subr.mxu0 0.0
    %778 = vmatpush2.msra.mxu0 0.0
    %779 = vmatprep.subr.mxu0 0.0
    %780 = vmatpush2.msra.mxu0 0.0
    %781 = vmatprep.subr.mxu0 0.0
    %782 = vmatpush2.msra.mxu0 0.0
    %783 = vmatprep.subr.mxu0 0.0
    %784 = vmatpush2.msra.mxu0 0.0
    %785 = vmatprep.subr.mxu0 0.0
    %786 = vmatpush2.msra.mxu0 0.0
    %787 = vmatprep.subr.mxu0 0.0
    %788 = vmatpush2.msra.mxu0 0.0
    %789 = vmatprep.mubr.f32.mxu0 0.0
    %790 = vmatmul.mubr.f32.gmra.mxu0 %v710
    %v791 = vpop.f32.mrf.mxu0
    %v792 = vadd.f32 %v707, %v791
    %v793 = vpop.f32.mrf.mxu0
    %v794 = vadd.f32 %v707, %v793
    %795 = vdwg.mxu0
    %796 = vmatprep.subr.mxu0 0.0
    %797 = vmatpush1.msra.mxu0 0.0
    %798 = vmatprep.subr.mxu0 0.0
    %799 = vmatpush1.msra.mxu0 0.0
    %800 = vmatprep.subr.mxu0 0.0
    %801 = vmatpush1.msra.mxu0 0.0
    %802 = vmatprep.subr.mxu0 0.0
    %803 = vmatpush1.msra.mxu0 0.0
    %804 = vmatprep.subr.mxu0 0.0
    %805 = vmatpush1.msra.mxu0 0.0
    %806 = vmatprep.subr.mxu0 0.0
    %807 = vmatpush1.msra.mxu0 0.0
    %808 = vmatprep.subr.mxu0 0.0
    %809 = vmatpush1.msra.mxu0 0.0
    %810 = vmatprep.subr.mxu0 0.0
    %811 = vmatpush1.msra.mxu0 0.0
    %812 = vmatprep.subr.mxu0 0.0
    %813 = vmatpush1.msra.mxu0 0.0
    %814 = vmatprep.subr.mxu0 0.0
    %815 = vmatpush1.msra.mxu0 0.0
    %816 = vmatprep.subr.mxu0 0.0
    %817 = vmatpush1.msra.mxu0 0.0
    %818 = vmatprep.subr.mxu0 %v723
    %819 = vmatpush1.msra.mxu0 %v720
    %820 = vmatprep.subr.mxu0 %v699
    %821 = vmatpush1.msra.mxu0 %v698
    %822 = vmatprep.subr.mxu0 %v695
    %823 = vmatpush1.msra.mxu0 %v694
    %824 = vmatprep.subr.mxu0 %v691
    %825 = vmatpush1.msra.mxu0 %v690
    %826 = vmatprep.subr.mxu0 %v687
    %827 = vmatpush1.msra.mxu0 %v686
    %828 = vmatprep.subr.mxu0 0.0
    %829 = vmatpush2.msra.mxu0 0.0
    %830 = vmatprep.subr.mxu0 0.0
    %831 = vmatpush2.msra.mxu0 0.0
    %832 = vmatprep.subr.mxu0 0.0
    %833 = vmatpush2.msra.mxu0 0.0
    %834 = vmatprep.subr.mxu0 0.0
    %835 = vmatpush2.msra.mxu0 0.0
    %836 = vmatprep.subr.mxu0 0.0
    %837 = vmatpush2.msra.mxu0 0.0
    %838 = vmatprep.subr.mxu0 0.0
    %839 = vmatpush2.msra.mxu0 0.0
    %840 = vmatprep.subr.mxu0 0.0
    %841 = vmatpush2.msra.mxu0 0.0
    %842 = vmatprep.subr.mxu0 0.0
    %843 = vmatpush2.msra.mxu0 0.0
    %844 = vmatprep.subr.mxu0 0.0
    %845 = vmatpush2.msra.mxu0 0.0
    %846 = vmatprep.subr.mxu0 0.0
    %847 = vmatpush2.msra.mxu0 0.0
    %848 = vmatprep.subr.mxu0 0.0
    %849 = vmatpush2.msra.mxu0 0.0
    %850 = vmatprep.subr.mxu0 0.0
    %851 = vmatpush2.msra.mxu0 0.0
    %852 = vmatprep.subr.mxu0 0.0
    %853 = vmatpush2.msra.mxu0 0.0
    %854 = vmatprep.subr.mxu0 0.0
    %855 = vmatpush2.msra.mxu0 0.0
    %856 = vmatprep.subr.mxu0 0.0
    %857 = vmatpush2.msra.mxu0 0.0
    %858 = vmatprep.subr.mxu0 0.0
    %859 = vmatpush2.msra.mxu0 0.0
    %860 = vmatprep.mubr.f32.mxu0 0.0
    %861 = vmatmul.mubr.f32.gmra.mxu0 %v710
    %v862 = vpop.f32.mrf.mxu0
    %v863 = vadd.f32 %v707, %v862
    %v864 = vpop.f32.mrf.mxu0
    %v865 = vadd.f32 %v707, %v864
    %866 = vdwg.mxu0
    %v867 = vmax.f32 %v792, 0.0
    %v868 = vmax.f32 %v794, 0.0
    %v869 = vmax.f32 %v863, 0.0
    %v870 = vmax.f32 %v865, 0.0
    %871 = vst [vmem:[#allocation4] sm:$0xff] %v867
    %872 = vst [vmem:[#allocation4 + $0x8] sm:$0xff] %v868
    %873 = vst [vmem:[#allocation4 + $0x10] sm:$0xff] %v869
    %874 = vst [vmem:[#allocation4 + $0x18] sm:$0xff] %v870
    %v875 = vld [vmem:[#allocation4] sm:$0xff]
    %v876 = vld [vmem:[#allocation4 + $0x8] sm:$0xff]
    %v877 = vld [vmem:[#allocation4 + $0x10] sm:$0xff]
    %v878 = vld [vmem:[#allocation4 + $0x18] sm:$0xff]
    %v879 = vld [vmem:[#allocation4] sm:$0xff]
    %v880 = vld [vmem:[#allocation4 + $0x8] sm:$0xff]
    %v881 = vld [vmem:[#allocation4 + $0x10] sm:$0xff]
    %v882 = vld [vmem:[#allocation4 + $0x18] sm:$0xff]
    %v883 = vld [vmem:[#allocation4 + $0x20] sm:$0xff]
    %889 = vrot.lane.b32.xlu0 %v879, 127
    %v890 = vpop.permute.xlu0 %889
    %891 = vrot.lane.b32.xlu0 %v880, 127
    %v892 = vpop.permute.xlu0 %891
    %893 = vrot.lane.b32.xlu0 %v881, 127
    %v894 = vpop.permute.xlu0 %893
    %895 = vrot.lane.b32.xlu0 %v882, 127
    %v896 = vpop.permute.xlu0 %895
    %897 = vrot.lane.b32.xlu0 %v883, 127
    %v898 = vpop.permute.xlu0 %897
    %v899 = vsel %vm303, %v890, %v892
    %v900 = vsel %vm303, %v892, %v894
    %v901 = vsel %vm303, %v894, %v896
    %v902 = vsel %vm303, %v896, %v898
    %v907 = vmax.f32 %v875, %v899
    %v908 = vmax.f32 %v876, %v900
    %v909 = vmax.f32 %v877, %v901
    %v910 = vmax.f32 %v878, %v902
    %v912 = vmax.f32 %v879, %v899
    %v913 = vmax.f32 %v880, %v900
    %v914 = vmax.f32 %v881, %v901
    %v915 = vmax.f32 %v882, %v902
    %v916 = vmax.f32 %v883, %v898
    %922 = vrot.lane.b32.xlu0 %v912, 126
    %v923 = vpop.permute.xlu0 %922
    %924 = vrot.lane.b32.xlu0 %v913, 126
    %v925 = vpop.permute.xlu0 %924
    %926 = vrot.lane.b32.xlu0 %v914, 126
    %v927 = vpop.permute.xlu0 %926
    %928 = vrot.lane.b32.xlu0 %v915, 126
    %v929 = vpop.permute.xlu0 %928
    %930 = vrot.lane.b32.xlu0 %v916, 126
    %v931 = vpop.permute.xlu0 %930
    %vm932 = vcmask 1031168
    %v933 = vsel %vm932, %v923, %v925
    %v934 = vsel %vm932, %v925, %v927
    %v935 = vsel %vm932, %v927, %v929
    %v936 = vsel %vm932, %v929, %v931
    %v941 = vmax.f32 %v907, %v933
    %v942 = vmax.f32 %v908, %v934
    %v943 = vmax.f32 %v909, %v935
    %v944 = vmax.f32 %v910, %v936
    %v946 = vmax.f32 %v912, %v933
    %v947 = vmax.f32 %v913, %v934
    %v948 = vmax.f32 %v914, %v935
    %v949 = vmax.f32 %v915, %v936
    %v950 = vmax.f32 %v916, %v931
    %956 = vrot.lane.b32.xlu0 %v946, 112
    %v957 = vpop.permute.xlu0 %956
    %958 = vrot.lane.b32.xlu0 %v947, 112
    %v959 = vpop.permute.xlu0 %958
    %960 = vrot.lane.b32.xlu0 %v948, 112
    %v961 = vpop.permute.xlu0 %960
    %962 = vrot.lane.b32.xlu0 %v949, 112
    %v963 = vpop.permute.xlu0 %962
    %964 = vrot.lane.b32.xlu0 %v950, 112
    %v965 = vpop.permute.xlu0 %964
    %v966 = vsel %vm150, %v957, %v959
    %v967 = vsel %vm150, %v959, %v961
    %v968 = vsel %vm150, %v961, %v963
    %v969 = vsel %vm150, %v963, %v965
    %v974 = vmax.f32 %v941, %v966
    %v975 = vmax.f32 %v942, %v967
    %v976 = vmax.f32 %v943, %v968
    %v977 = vmax.f32 %v944, %v969
    %v979 = vmax.f32 %v946, %v966
    %v980 = vmax.f32 %v947, %v967
    %v981 = vmax.f32 %v948, %v968
    %v982 = vmax.f32 %v949, %v969
    %v983 = vmax.f32 %v950, %v965
    %989 = vrot.lane.b32.xlu0 %v979, 96
    %v990 = vpop.permute.xlu0 %989
    %991 = vrot.lane.b32.xlu0 %v980, 96
    %v992 = vpop.permute.xlu0 %991
    %993 = vrot.lane.b32.xlu0 %v981, 96
    %v994 = vpop.permute.xlu0 %993
    %995 = vrot.lane.b32.xlu0 %v982, 96
    %v996 = vpop.permute.xlu0 %995
    %997 = vrot.lane.b32.xlu0 %v983, 96
    %v998 = vpop.permute.xlu0 %997
    %vm999 = vcmask 785408
    %v1000 = vsel %vm999, %v990, %v992
    %v1001 = vsel %vm999, %v992, %v994
    %v1002 = vsel %vm999, %v994, %v996
    %v1003 = vsel %vm999, %v996, %v998
    %v1008 = vmax.f32 %v974, %v1000
    %v1009 = vmax.f32 %v975, %v1001
    %v1010 = vmax.f32 %v976, %v1002
    %v1011 = vmax.f32 %v977, %v1003
    %1012 = vst [vmem:[#allocation2 + $0x8] sm:$0xff] %v1008
    %1013 = vst [vmem:[#allocation2 + $0x10] sm:$0xff] %v1009
    %1014 = vst [vmem:[#allocation2 + $0x18] sm:$0xff] %v1010
    %1015 = vst [vmem:[#allocation2 + $0x20] sm:$0xff] %v1011
    %v1016 = vld [vmem:[#allocation2] sm:$0xff]
    %v1017 = vld [vmem:[#allocation2 + $0x8] sm:$0xff]
    %v1018 = vld [vmem:[#allocation2 + $0x10] sm:$0xff]
    %v1019 = vld [vmem:[#allocation2 + $0x18] sm:$0xff]
    %v1020 = vld [vmem:[#allocation2 + $0x20] sm:$0xff]
    %s1021 = scalar_lea.vmem [#allocation5], 33
    %v1022 = vld [vmem:[%s1021] ss:$8 sm:$0xf]
    %v1024 = vlaneseq
    %v1025 = vshrl.u32 %v1024, 7
    %v1026 = vsub.s32 0, %v1025
    %v1027 = vrot.slane %v1022, %v1026
    %v1028 = vlaneseq
    %v1029 = vshrl.u32 %v1028, 7
    %v1030 = vsub.s32 1, %v1029
    %v1031 = vrot.slane %v1022, %v1030
    %v1032 = vlaneseq
    %v1033 = vshrl.u32 %v1032, 7
    %v1034 = vsub.s32 2, %v1033
    %v1035 = vrot.slane %v1022, %v1034
    %v1036 = vlaneseq
    %v1037 = vshrl.u32 %v1036, 7
    %v1038 = vsub.s32 3, %v1037
    %v1039 = vrot.slane %v1022, %v1038
    %1040 = vrot.lane.b32.xlu0 %v1027, 94
    %v1041 = vpop.permute.xlu0 %1040
    %1042 = vrot.lane.b32.xlu0 %v1031, 94
    %v1043 = vpop.permute.xlu0 %1042
    %1044 = vrot.lane.b32.xlu0 %v1035, 94
    %v1045 = vpop.permute.xlu0 %1044
    %1046 = vrot.lane.b32.xlu0 %v1039, 94
    %v1047 = vpop.permute.xlu0 %1046
    %vm1048 = vcmask 769024
    %v1049 = vsel %vm1048, %v1041, %v1043
    %v1050 = vsel %vm1048, %v1043, %v1045
    %v1051 = vsel %vm1048, %v1045, %v1047
    %v1057 = vmul.f32 %v1016, %v1041
    %v1058 = vmul.f32 %v1017, %v1049
    %v1059 = vmul.f32 %v1018, %v1050
    %v1060 = vmul.f32 %v1019, %v1051
    %v1061 = vmul.f32 %v1020, %v1047
    %1067 = vrot.lane.b32.xlu0 %v1057, 34
    %v1068 = vpop.permute.xlu0 %1067
    %1069 = vrot.lane.b32.xlu0 %v1058, 34
    %v1070 = vpop.permute.xlu0 %1069
    %1071 = vrot.lane.b32.xlu0 %v1059, 34
    %v1072 = vpop.permute.xlu0 %1071
    %1073 = vrot.lane.b32.xlu0 %v1060, 34
    %v1074 = vpop.permute.xlu0 %1073
    %1075 = vrot.lane.b32.xlu0 %v1061, 34
    %v1076 = vpop.permute.xlu0 %1075
    %vm1077 = vcmask 277504
    %v1078 = vsel %vm1077, %v1068, %v1070
    %v1079 = vsel %vm1077, %v1070, %v1072
    %v1080 = vsel %vm1077, %v1072, %v1074
    %v1081 = vsel %vm1077, %v1074, %v1076
    %1086 = vst [vmem:[#allocation3] sm:$0xff] %v1078
    %1087 = vst [vmem:[#allocation3 + $0x8] sm:$0xff] %v1079
    %1088 = vst [vmem:[#allocation3 + $0x10] sm:$0xff] %v1080
    %1089 = vst [vmem:[#allocation3 + $0x18] sm:$0xff] %v1081
    %v1090 = vld [vmem:[#allocation2] sm:$0xff]
    %v1091 = vld [vmem:[#allocation2 + $0x8] sm:$0xff]
    %v1092 = vld [vmem:[#allocation2 + $0x10] sm:$0xff]
    %v1093 = vld [vmem:[#allocation2 + $0x18] sm:$0xff]
    %v1094 = vld [vmem:[#allocation2 + $0x20] sm:$0xff]
    %s1095 = scalar_lea.vmem [#allocation5], 34
    %v1096 = vld [vmem:[%s1095] ss:$8 sm:$0xf]
    %v1098 = vlaneseq
    %v1099 = vshrl.u32 %v1098, 7
    %v1100 = vsub.s32 0, %v1099
    %v1101 = vrot.slane %v1096, %v1100
    %v1102 = vlaneseq
    %v1103 = vshrl.u32 %v1102, 7
    %v1104 = vsub.s32 1, %v1103
    %v1105 = vrot.slane %v1096, %v1104
    %v1106 = vlaneseq
    %v1107 = vshrl.u32 %v1106, 7
    %v1108 = vsub.s32 2, %v1107
    %v1109 = vrot.slane %v1096, %v1108
    %v1110 = vlaneseq
    %v1111 = vshrl.u32 %v1110, 7
    %v1112 = vsub.s32 3, %v1111
    %v1113 = vrot.slane %v1096, %v1112
    %1114 = vrot.lane.b32.xlu0 %v1101, 96
    %v1115 = vpop.permute.xlu0 %1114
    %1116 = vrot.lane.b32.xlu0 %v1105, 96
    %v1117 = vpop.permute.xlu0 %1116
    %1118 = vrot.lane.b32.xlu0 %v1109, 96
    %v1119 = vpop.permute.xlu0 %1118
    %1120 = vrot.lane.b32.xlu0 %v1113, 96
    %v1121 = vpop.permute.xlu0 %1120
    %v1122 = vsel %vm999, %v1115, %v1117
    %v1123 = vsel %vm999, %v1117, %v1119
    %v1124 = vsel %vm999, %v1119, %v1121
    %v1130 = vmul.f32 %v1090, %v1115
    %v1131 = vmul.f32 %v1091, %v1122
    %v1132 = vmul.f32 %v1092, %v1123
    %v1133 = vmul.f32 %v1093, %v1124
    %v1134 = vmul.f32 %v1094, %v1121
    %1140 = vrot.lane.b32.xlu0 %v1130, 32
    %v1141 = vpop.permute.xlu0 %1140
    %1142 = vrot.lane.b32.xlu0 %v1131, 32
    %v1143 = vpop.permute.xlu0 %1142
    %1144 = vrot.lane.b32.xlu0 %v1132, 32
    %v1145 = vpop.permute.xlu0 %1144
    %1146 = vrot.lane.b32.xlu0 %v1133, 32
    %v1147 = vpop.permute.xlu0 %1146
    %1148 = vrot.lane.b32.xlu0 %v1134, 32
    %v1149 = vpop.permute.xlu0 %1148
    %vm1150 = vcmask 261120
    %v1151 = vsel %vm1150, %v1141, %v1143
    %v1152 = vsel %vm1150, %v1143, %v1145
    %v1153 = vsel %vm1150, %v1145, %v1147
    %v1154 = vsel %vm1150, %v1147, %v1149
    %1159 = vst [vmem:[#allocation3 + $0x20] sm:$0xff] %v1151
    %1160 = vst [vmem:[#allocation3 + $0x28] sm:$0xff] %v1152
    %1161 = vst [vmem:[#allocation3 + $0x30] sm:$0xff] %v1153
    %1162 = vst [vmem:[#allocation3 + $0x38] sm:$0xff] %v1154
    %v1163 = vld [vmem:[#allocation2] sm:$0xff]
    %v1164 = vld [vmem:[#allocation2 + $0x8] sm:$0xff]
    %v1165 = vld [vmem:[#allocation2 + $0x10] sm:$0xff]
    %v1166 = vld [vmem:[#allocation2 + $0x18] sm:$0xff]
    %v1167 = vld [vmem:[#allocation2 + $0x20] sm:$0xff]
    %s1168 = scalar_lea.vmem [#allocation5], 35
    %v1169 = vld [vmem:[%s1168] ss:$8 sm:$0xf]
    %v1171 = vlaneseq
    %v1172 = vshrl.u32 %v1171, 7
    %v1173 = vsub.s32 0, %v1172
    %v1174 = vrot.slane %v1169, %v1173
    %v1175 = vlaneseq
    %v1176 = vshrl.u32 %v1175, 7
    %v1177 = vsub.s32 1, %v1176
    %v1178 = vrot.slane %v1169, %v1177
    %v1179 = vlaneseq
    %v1180 = vshrl.u32 %v1179, 7
    %v1181 = vsub.s32 2, %v1180
    %v1182 = vrot.slane %v1169, %v1181
    %v1183 = vlaneseq
    %v1184 = vshrl.u32 %v1183, 7
    %v1185 = vsub.s32 3, %v1184
    %v1186 = vrot.slane %v1169, %v1185
    %1187 = vrot.lane.b32.xlu0 %v1174, 98
    %v1188 = vpop.permute.xlu0 %1187
    %1189 = vrot.lane.b32.xlu0 %v1178, 98
    %v1190 = vpop.permute.xlu0 %1189
    %1191 = vrot.lane.b32.xlu0 %v1182, 98
    %v1192 = vpop.permute.xlu0 %1191
    %1193 = vrot.lane.b32.xlu0 %v1186, 98
    %v1194 = vpop.permute.xlu0 %1193
    %vm1195 = vcmask 801792
    %v1196 = vsel %vm1195, %v1188, %v1190
    %v1197 = vsel %vm1195, %v1190, %v1192
    %v1198 = vsel %vm1195, %v1192, %v1194
    %v1204 = vmul.f32 %v1163, %v1188
    %v1205 = vmul.f32 %v1164, %v1196
    %v1206 = vmul.f32 %v1165, %v1197
    %v1207 = vmul.f32 %v1166, %v1198
    %v1208 = vmul.f32 %v1167, %v1194
    %1214 = vrot.lane.b32.xlu0 %v1204, 30
    %v1215 = vpop.permute.xlu0 %1214
    %1216 = vrot.lane.b32.xlu0 %v1205, 30
    %v1217 = vpop.permute.xlu0 %1216
    %1218 = vrot.lane.b32.xlu0 %v1206, 30
    %v1219 = vpop.permute.xlu0 %1218
    %1220 = vrot.lane.b32.xlu0 %v1207, 30
    %v1221 = vpop.permute.xlu0 %1220
    %1222 = vrot.lane.b32.xlu0 %v1208, 30
    %v1223 = vpop.permute.xlu0 %1222
    %vm1224 = vcmask 244736
    %v1225 = vsel %vm1224, %v1215, %v1217
    %v1226 = vsel %vm1224, %v1217, %v1219
    %v1227 = vsel %vm1224, %v1219, %v1221
    %v1228 = vsel %vm1224, %v1221, %v1223
    %1233 = vst [vmem:[#allocation3 + $0x40] sm:$0xff] %v1225
    %1234 = vst [vmem:[#allocation3 + $0x48] sm:$0xff] %v1226
    %1235 = vst [vmem:[#allocation3 + $0x50] sm:$0xff] %v1227
    %1236 = vst [vmem:[#allocation3 + $0x58] sm:$0xff] %v1228
    %v1237 = vld [vmem:[#allocation2] sm:$0xff]
    %v1238 = vld [vmem:[#allocation2 + $0x8] sm:$0xff]
    %v1239 = vld [vmem:[#allocation2 + $0x10] sm:$0xff]
    %v1240 = vld [vmem:[#allocation2 + $0x18] sm:$0xff]
    %v1241 = vld [vmem:[#allocation2 + $0x20] sm:$0xff]
    %s1242 = scalar_lea.vmem [#allocation5], 36
    %v1243 = vld [vmem:[%s1242] ss:$8 sm:$0xf]
    %v1245 = vlaneseq
    %v1246 = vshrl.u32 %v1245, 7
    %v1247 = vsub.s32 0, %v1246
    %v1248 = vrot.slane %v1243, %v1247
    %v1249 = vlaneseq
    %v1250 = vshrl.u32 %v1249, 7
    %v1251 = vsub.s32 1, %v1250
    %v1252 = vrot.slane %v1243, %v1251
    %v1253 = vlaneseq
    %v1254 = vshrl.u32 %v1253, 7
    %v1255 = vsub.s32 2, %v1254
    %v1256 = vrot.slane %v1243, %v1255
    %v1257 = vlaneseq
    %v1258 = vshrl.u32 %v1257, 7
    %v1259 = vsub.s32 3, %v1258
    %v1260 = vrot.slane %v1243, %v1259
    %1261 = vrot.lane.b32.xlu0 %v1248, 126
    %v1262 = vpop.permute.xlu0 %1261
    %1263 = vrot.lane.b32.xlu0 %v1252, 126
    %v1264 = vpop.permute.xlu0 %1263
    %1265 = vrot.lane.b32.xlu0 %v1256, 126
    %v1266 = vpop.permute.xlu0 %1265
    %1267 = vrot.lane.b32.xlu0 %v1260, 126
    %v1268 = vpop.permute.xlu0 %1267
    %v1269 = vsel %vm932, %v1262, %v1264
    %v1270 = vsel %vm932, %v1264, %v1266
    %v1271 = vsel %vm932, %v1266, %v1268
    %v1277 = vmul.f32 %v1237, %v1262
    %v1278 = vmul.f32 %v1238, %v1269
    %v1279 = vmul.f32 %v1239, %v1270
    %v1280 = vmul.f32 %v1240, %v1271
    %v1281 = vmul.f32 %v1241, %v1268
    %1287 = vrot.lane.b32.xlu0 %v1277, 2
    %v1288 = vpop.permute.xlu0 %1287
    %1289 = vrot.lane.b32.xlu0 %v1278, 2
    %v1290 = vpop.permute.xlu0 %1289
    %1291 = vrot.lane.b32.xlu0 %v1279, 2
    %v1292 = vpop.permute.xlu0 %1291
    %1293 = vrot.lane.b32.xlu0 %v1280, 2
    %v1294 = vpop.permute.xlu0 %1293
    %1295 = vrot.lane.b32.xlu0 %v1281, 2
    %v1296 = vpop.permute.xlu0 %1295
    %vm1297 = vcmask 15360
    %v1298 = vsel %vm1297, %v1288, %v1290
    %v1299 = vsel %vm1297, %v1290, %v1292
    %v1300 = vsel %vm1297, %v1292, %v1294
    %v1301 = vsel %vm1297, %v1294, %v1296
    %1306 = vst [vmem:[#allocation3 + $0x60] sm:$0xff] %v1298
    %1307 = vst [vmem:[#allocation3 + $0x68] sm:$0xff] %v1299
    %1308 = vst [vmem:[#allocation3 + $0x70] sm:$0xff] %v1300
    %1309 = vst [vmem:[#allocation3 + $0x78] sm:$0xff] %v1301
    %v1310 = vld [vmem:[#allocation2 + $0x8] sm:$0xff]
    %v1311 = vld [vmem:[#allocation2 + $0x10] sm:$0xff]
    %v1312 = vld [vmem:[#allocation2 + $0x18] sm:$0xff]
    %v1313 = vld [vmem:[#allocation2 + $0x20] sm:$0xff]
    %s1314 = scalar_lea.vmem [#allocation5], 37
    %v1315 = vld [vmem:[%s1314] ss:$8 sm:$0xf]
    %v1317 = vlaneseq
    %v1318 = vshrl.u32 %v1317, 7
    %v1319 = vsub.s32 0, %v1318
    %v1320 = vrot.slane %v1315, %v1319
    %v1321 = vlaneseq
    %v1322 = vshrl.u32 %v1321, 7
    %v1323 = vsub.s32 1, %v1322
    %v1324 = vrot.slane %v1315, %v1323
    %v1325 = vlaneseq
    %v1326 = vshrl.u32 %v1325, 7
    %v1327 = vsub.s32 2, %v1326
    %v1328 = vrot.slane %v1315, %v1327
    %v1329 = vlaneseq
    %v1330 = vshrl.u32 %v1329, 7
    %v1331 = vsub.s32 3, %v1330
    %v1332 = vrot.slane %v1315, %v1331
    %v1337 = vmul.f32 %v1310, %v1320
    %v1338 = vmul.f32 %v1311, %v1324
    %v1339 = vmul.f32 %v1312, %v1328
    %v1340 = vmul.f32 %v1313, %v1332
    %1341 = vst [vmem:[#allocation3 + $0x80] sm:$0xff] %v1337
    %1342 = vst [vmem:[#allocation3 + $0x88] sm:$0xff] %v1338
    %1343 = vst [vmem:[#allocation3 + $0x90] sm:$0xff] %v1339
    %1344 = vst [vmem:[#allocation3 + $0x98] sm:$0xff] %v1340
    %v1345 = vld [vmem:[#allocation2 + $0x8] sm:$0xff]
    %v1346 = vld [vmem:[#allocation2 + $0x10] sm:$0xff]
    %v1347 = vld [vmem:[#allocation2 + $0x18] sm:$0xff]
    %v1348 = vld [vmem:[#allocation2 + $0x20] sm:$0xff]
    %v1349 = vld [vmem:[#allocation2 + $0x28] sm:$0xff]
    %s1350 = scalar_lea.vmem [#allocation5], 38
    %v1351 = vld [vmem:[%s1350] ss:$8 sm:$0xf]
    %v1353 = vlaneseq
    %v1354 = vshrl.u32 %v1353, 7
    %v1355 = vsub.s32 0, %v1354
    %v1356 = vrot.slane %v1351, %v1355
    %v1357 = vlaneseq
    %v1358 = vshrl.u32 %v1357, 7
    %v1359 = vsub.s32 1, %v1358
    %v1360 = vrot.slane %v1351, %v1359
    %v1361 = vlaneseq
    %v1362 = vshrl.u32 %v1361, 7
    %v1363 = vsub.s32 2, %v1362
    %v1364 = vrot.slane %v1351, %v1363
    %v1365 = vlaneseq
    %v1366 = vshrl.u32 %v1365, 7
    %v1367 = vsub.s32 3, %v1366
    %v1368 = vrot.slane %v1351, %v1367
    %1369 = vrot.lane.b32.xlu0 %v1356, 2
    %v1370 = vpop.permute.xlu0 %1369
    %1371 = vrot.lane.b32.xlu0 %v1360, 2
    %v1372 = vpop.permute.xlu0 %1371
    %1373 = vrot.lane.b32.xlu0 %v1364, 2
    %v1374 = vpop.permute.xlu0 %1373
    %1375 = vrot.lane.b32.xlu0 %v1368, 2
    %v1376 = vpop.permute.xlu0 %1375
    %v1377 = vsel %vm1297, %v1370, %v1372
    %v1378 = vsel %vm1297, %v1372, %v1374
    %v1379 = vsel %vm1297, %v1374, %v1376
    %v1385 = vmul.f32 %v1345, %v1370
    %v1386 = vmul.f32 %v1346, %v1377
    %v1387 = vmul.f32 %v1347, %v1378
    %v1388 = vmul.f32 %v1348, %v1379
    %v1389 = vmul.f32 %v1349, %v1376
    %1395 = vrot.lane.b32.xlu0 %v1385, 126
    %v1396 = vpop.permute.xlu0 %1395
    %1397 = vrot.lane.b32.xlu0 %v1386, 126
    %v1398 = vpop.permute.xlu0 %1397
    %1399 = vrot.lane.b32.xlu0 %v1387, 126
    %v1400 = vpop.permute.xlu0 %1399
    %1401 = vrot.lane.b32.xlu0 %v1388, 126
    %v1402 = vpop.permute.xlu0 %1401
    %1403 = vrot.lane.b32.xlu0 %v1389, 126
    %v1404 = vpop.permute.xlu0 %1403
    %v1405 = vsel %vm932, %v1396, %v1398
    %v1406 = vsel %vm932, %v1398, %v1400
    %v1407 = vsel %vm932, %v1400, %v1402
    %v1408 = vsel %vm932, %v1402, %v1404
    %1413 = vst [vmem:[#allocation3 + $0xa0] sm:$0xff] %v1405
    %1414 = vst [vmem:[#allocation3 + $0xa8] sm:$0xff] %v1406
    %1415 = vst [vmem:[#allocation3 + $0xb0] sm:$0xff] %v1407
    %1416 = vst [vmem:[#allocation3 + $0xb8] sm:$0xff] %v1408
    %v1417 = vld [vmem:[#allocation2 + $0x8] sm:$0xff]
    %v1418 = vld [vmem:[#allocation2 + $0x10] sm:$0xff]
    %v1419 = vld [vmem:[#allocation2 + $0x18] sm:$0xff]
    %v1420 = vld [vmem:[#allocation2 + $0x20] sm:$0xff]
    %v1421 = vld [vmem:[#allocation2 + $0x28] sm:$0xff]
    %s1422 = scalar_lea.vmem [#allocation5], 39
    %v1423 = vld [vmem:[%s1422] ss:$8 sm:$0xf]
    %v1425 = vlaneseq
    %v1426 = vshrl.u32 %v1425, 7
    %v1427 = vsub.s32 0, %v1426
    %v1428 = vrot.slane %v1423, %v1427
    %v1429 = vlaneseq
    %v1430 = vshrl.u32 %v1429, 7
    %v1431 = vsub.s32 1, %v1430
    %v1432 = vrot.slane %v1423, %v1431
    %v1433 = vlaneseq
    %v1434 = vshrl.u32 %v1433, 7
    %v1435 = vsub.s32 2, %v1434
    %v1436 = vrot.slane %v1423, %v1435
    %v1437 = vlaneseq
    %v1438 = vshrl.u32 %v1437, 7
    %v1439 = vsub.s32 3, %v1438
    %v1440 = vrot.slane %v1423, %v1439
    %1441 = vrot.lane.b32.xlu0 %v1428, 30
    %v1442 = vpop.permute.xlu0 %1441
    %1443 = vrot.lane.b32.xlu0 %v1432, 30
    %v1444 = vpop.permute.xlu0 %1443
    %1445 = vrot.lane.b32.xlu0 %v1436, 30
    %v1446 = vpop.permute.xlu0 %1445
    %1447 = vrot.lane.b32.xlu0 %v1440, 30
    %v1448 = vpop.permute.xlu0 %1447
    %v1449 = vsel %vm1224, %v1442, %v1444
    %v1450 = vsel %vm1224, %v1444, %v1446
    %v1451 = vsel %vm1224, %v1446, %v1448
    %v1457 = vmul.f32 %v1417, %v1442
    %v1458 = vmul.f32 %v1418, %v1449
    %v1459 = vmul.f32 %v1419, %v1450
    %v1460 = vmul.f32 %v1420, %v1451
    %v1461 = vmul.f32 %v1421, %v1448
    %1467 = vrot.lane.b32.xlu0 %v1457, 98
    %v1468 = vpop.permute.xlu0 %1467
    %1469 = vrot.lane.b32.xlu0 %v1458, 98
    %v1470 = vpop.permute.xlu0 %1469
    %1471 = vrot.lane.b32.xlu0 %v1459, 98
    %v1472 = vpop.permute.xlu0 %1471
    %1473 = vrot.lane.b32.xlu0 %v1460, 98
    %v1474 = vpop.permute.xlu0 %1473
    %1475 = vrot.lane.b32.xlu0 %v1461, 98
    %v1476 = vpop.permute.xlu0 %1475
    %v1477 = vsel %vm1195, %v1468, %v1470
    %v1478 = vsel %vm1195, %v1470, %v1472
    %v1479 = vsel %vm1195, %v1472, %v1474
    %v1480 = vsel %vm1195, %v1474, %v1476
    %1485 = vst [vmem:[#allocation3 + $0xc0] sm:$0xff] %v1477
    %1486 = vst [vmem:[#allocation3 + $0xc8] sm:$0xff] %v1478
    %1487 = vst [vmem:[#allocation3 + $0xd0] sm:$0xff] %v1479
    %1488 = vst [vmem:[#allocation3 + $0xd8] sm:$0xff] %v1480
    %v1489 = vld [vmem:[#allocation2 + $0x8] sm:$0xff]
    %v1490 = vld [vmem:[#allocation2 + $0x10] sm:$0xff]
    %v1491 = vld [vmem:[#allocation2 + $0x18] sm:$0xff]
    %v1492 = vld [vmem:[#allocation2 + $0x20] sm:$0xff]
    %v1493 = vld [vmem:[#allocation2 + $0x28] sm:$0xff]
    %s1494 = scalar_lea.vmem [#allocation5], 64
    %v1495 = vld [vmem:[%s1494] ss:$8 sm:$0xf]
    %v1497 = vlaneseq
    %v1498 = vshrl.u32 %v1497, 7
    %v1499 = vsub.s32 0, %v1498
    %v1500 = vrot.slane %v1495, %v1499
    %v1501 = vlaneseq
    %v1502 = vshrl.u32 %v1501, 7
    %v1503 = vsub.s32 1, %v1502
    %v1504 = vrot.slane %v1495, %v1503
    %v1505 = vlaneseq
    %v1506 = vshrl.u32 %v1505, 7
    %v1507 = vsub.s32 2, %v1506
    %v1508 = vrot.slane %v1495, %v1507
    %v1509 = vlaneseq
    %v1510 = vshrl.u32 %v1509, 7
    %v1511 = vsub.s32 3, %v1510
    %v1512 = vrot.slane %v1495, %v1511
    %1513 = vrot.lane.b32.xlu0 %v1500, 32
    %v1514 = vpop.permute.xlu0 %1513
    %1515 = vrot.lane.b32.xlu0 %v1504, 32
    %v1516 = vpop.permute.xlu0 %1515
    %1517 = vrot.lane.b32.xlu0 %v1508, 32
    %v1518 = vpop.permute.xlu0 %1517
    %1519 = vrot.lane.b32.xlu0 %v1512, 32
    %v1520 = vpop.permute.xlu0 %1519
    %v1521 = vsel %vm1150, %v1514, %v1516
    %v1522 = vsel %vm1150, %v1516, %v1518
    %v1523 = vsel %vm1150, %v1518, %v1520
    %v1529 = vmul.f32 %v1489, %v1514
    %v1530 = vmul.f32 %v1490, %v1521
    %v1531 = vmul.f32 %v1491, %v1522
    %v1532 = vmul.f32 %v1492, %v1523
    %v1533 = vmul.f32 %v1493, %v1520
    %1539 = vrot.lane.b32.xlu0 %v1529, 96
    %v1540 = vpop.permute.xlu0 %1539
    %1541 = vrot.lane.b32.xlu0 %v1530, 96
    %v1542 = vpop.permute.xlu0 %1541
    %1543 = vrot.lane.b32.xlu0 %v1531, 96
    %v1544 = vpop.permute.xlu0 %1543
    %1545 = vrot.lane.b32.xlu0 %v1532, 96
    %v1546 = vpop.permute.xlu0 %1545
    %1547 = vrot.lane.b32.xlu0 %v1533, 96
    %v1548 = vpop.permute.xlu0 %1547
    %v1549 = vsel %vm999, %v1540, %v1542
    %v1550 = vsel %vm999, %v1542, %v1544
    %v1551 = vsel %vm999, %v1544, %v1546
    %v1552 = vsel %vm999, %v1546, %v1548
    %1557 = vst [vmem:[#allocation3 + $0xe0] sm:$0xff] %v1549
    %1558 = vst [vmem:[#allocation3 + $0xe8] sm:$0xff] %v1550
    %1559 = vst [vmem:[#allocation3 + $0xf0] sm:$0xff] %v1551
    %1560 = vst [vmem:[#allocation3 + $0xf8] sm:$0xff] %v1552
    %v1561 = vld [vmem:[#allocation2 + $0x8] sm:$0xff]
    %v1562 = vld [vmem:[#allocation2 + $0x10] sm:$0xff]
    %v1563 = vld [vmem:[#allocation2 + $0x18] sm:$0xff]
    %v1564 = vld [vmem:[#allocation2 + $0x20] sm:$0xff]
    %v1565 = vld [vmem:[#allocation2 + $0x28] sm:$0xff]
    %s1566 = scalar_lea.vmem [#allocation5], 65
    %v1567 = vld [vmem:[%s1566] ss:$8 sm:$0xf]
    %v1569 = vlaneseq
    %v1570 = vshrl.u32 %v1569, 7
    %v1571 = vsub.s32 0, %v1570
    %v1572 = vrot.slane %v1567, %v1571
    %v1573 = vlaneseq
    %v1574 = vshrl.u32 %v1573, 7
    %v1575 = vsub.s32 1, %v1574
    %v1576 = vrot.slane %v1567, %v1575
    %v1577 = vlaneseq
    %v1578 = vshrl.u32 %v1577, 7
    %v1579 = vsub.s32 2, %v1578
    %v1580 = vrot.slane %v1567, %v1579
    %v1581 = vlaneseq
    %v1582 = vshrl.u32 %v1581, 7
    %v1583 = vsub.s32 3, %v1582
    %v1584 = vrot.slane %v1567, %v1583
    %1585 = vrot.lane.b32.xlu0 %v1572, 34
    %v1586 = vpop.permute.xlu0 %1585
    %1587 = vrot.lane.b32.xlu0 %v1576, 34
    %v1588 = vpop.permute.xlu0 %1587
    %1589 = vrot.lane.b32.xlu0 %v1580, 34
    %v1590 = vpop.permute.xlu0 %1589
    %1591 = vrot.lane.b32.xlu0 %v1584, 34
    %v1592 = vpop.permute.xlu0 %1591
    %v1593 = vsel %vm1077, %v1586, %v1588
    %v1594 = vsel %vm1077, %v1588, %v1590
    %v1595 = vsel %vm1077, %v1590, %v1592
    %v1601 = vmul.f32 %v1561, %v1586
    %v1602 = vmul.f32 %v1562, %v1593
    %v1603 = vmul.f32 %v1563, %v1594
    %v1604 = vmul.f32 %v1564, %v1595
    %v1605 = vmul.f32 %v1565, %v1592
    %1611 = vrot.lane.b32.xlu0 %v1601, 94
    %v1612 = vpop.permute.xlu0 %1611
    %1613 = vrot.lane.b32.xlu0 %v1602, 94
    %v1614 = vpop.permute.xlu0 %1613
    %1615 = vrot.lane.b32.xlu0 %v1603, 94
    %v1616 = vpop.permute.xlu0 %1615
    %1617 = vrot.lane.b32.xlu0 %v1604, 94
    %v1618 = vpop.permute.xlu0 %1617
    %1619 = vrot.lane.b32.xlu0 %v1605, 94
    %v1620 = vpop.permute.xlu0 %1619
    %v1621 = vsel %vm1048, %v1612, %v1614
    %v1622 = vsel %vm1048, %v1614, %v1616
    %v1623 = vsel %vm1048, %v1616, %v1618
    %v1624 = vsel %vm1048, %v1618, %v1620
    %1629 = vst [vmem:[#allocation3 + $0x100] sm:$0xff] %v1621
    %1630 = vst [vmem:[#allocation3 + $0x108] sm:$0xff] %v1622
    %1631 = vst [vmem:[#allocation3 + $0x110] sm:$0xff] %v1623
    %1632 = vst [vmem:[#allocation3 + $0x118] sm:$0xff] %v1624
    %v1633 = vld [vmem:[%s2 + $0x8] sm:$0xff]
    %v1634 = vld [vmem:[#allocation3] sm:$0xff]
    %v1635 = vld [vmem:[#allocation3 + $0x8] sm:$0xff]
    %v1636 = vld [vmem:[#allocation3 + $0x10] sm:$0xff]
    %v1637 = vld [vmem:[#allocation3 + $0x18] sm:$0xff]
    %v1638 = vld [vmem:[#allocation3 + $0x20] sm:$0xff]
    %v1639 = vld [vmem:[#allocation3 + $0x28] sm:$0xff]
    %v1640 = vld [vmem:[#allocation3 + $0x30] sm:$0xff]
    %v1641 = vld [vmem:[#allocation3 + $0x38] sm:$0xff]
    %v1642 = vld [vmem:[#allocation3 + $0x40] sm:$0xff]
    %v1643 = vld [vmem:[#allocation3 + $0x48] sm:$0xff]
    %v1644 = vld [vmem:[#allocation3 + $0x50] sm:$0xff]
    %v1645 = vld [vmem:[#allocation3 + $0x58] sm:$0xff]
    %v1646 = vld [vmem:[#allocation3 + $0x60] sm:$0xff]
    %v1647 = vld [vmem:[#allocation3 + $0x68] sm:$0xff]
    %v1648 = vld [vmem:[#allocation3 + $0x70] sm:$0xff]
    %v1649 = vld [vmem:[#allocation3 + $0x78] sm:$0xff]
    %v1650 = vld [vmem:[#allocation3 + $0x80] sm:$0xff]
    %v1651 = vld [vmem:[#allocation3 + $0x88] sm:$0xff]
    %v1652 = vld [vmem:[#allocation3 + $0x90] sm:$0xff]
    %v1653 = vld [vmem:[#allocation3 + $0x98] sm:$0xff]
    %v1654 = vld [vmem:[#allocation3 + $0xa0] sm:$0xff]
    %v1655 = vld [vmem:[#allocation3 + $0xa8] sm:$0xff]
    %v1656 = vld [vmem:[#allocation3 + $0xb0] sm:$0xff]
    %v1657 = vld [vmem:[#allocation3 + $0xb8] sm:$0xff]
    %v1658 = vld [vmem:[#allocation3 + $0xc0] sm:$0xff]
    %v1659 = vld [vmem:[#allocation3 + $0xc8] sm:$0xff]
    %v1660 = vld [vmem:[#allocation3 + $0xd0] sm:$0xff]
    %v1661 = vld [vmem:[#allocation3 + $0xd8] sm:$0xff]
    %v1662 = vld [vmem:[#allocation3 + $0xe0] sm:$0xff]
    %v1663 = vld [vmem:[#allocation3 + $0xe8] sm:$0xff]
    %v1664 = vld [vmem:[#allocation3 + $0xf0] sm:$0xff]
    %v1665 = vld [vmem:[#allocation3 + $0xf8] sm:$0xff]
    %v1666 = vld [vmem:[#allocation3 + $0x100] sm:$0xff]
    %v1667 = vld [vmem:[#allocation3 + $0x108] sm:$0xff]
    %v1668 = vld [vmem:[#allocation3 + $0x110] sm:$0xff]
    %v1669 = vld [vmem:[#allocation3 + $0x118] sm:$0xff]
    %1671 = vset.pattern.permute.xlu0 72
    %1672 = vperm.xlu0 %1671, %v1633
    %v1673 = vpop.permute.xlu0 %1672
    %vm1675 = vcmask 588800
    %v1676 = vsel %vm1675, %v1633, 0
    %1678 = vmatprep.subr.mxu0 0.0
    %1679 = vmatpush1.msra.mxu0 0.0
    %1680 = vmatprep.subr.mxu0 0.0
    %1681 = vmatpush1.msra.mxu0 0.0
    %1682 = vmatprep.subr.mxu0 0.0
    %1683 = vmatpush1.msra.mxu0 0.0
    %1684 = vmatprep.subr.mxu0 0.0
    %1685 = vmatpush1.msra.mxu0 0.0
    %1686 = vmatprep.subr.mxu0 0.0
    %1687 = vmatpush1.msra.mxu0 0.0
    %1688 = vmatprep.subr.mxu0 0.0
    %1689 = vmatpush1.msra.mxu0 0.0
    %1690 = vmatprep.subr.mxu0 0.0
    %1691 = vmatpush1.msra.mxu0 0.0
    %1692 = vmatprep.subr.mxu0 %v1667
    %1693 = vmatpush1.msra.mxu0 %v1666
    %1694 = vmatprep.subr.mxu0 %v1663
    %1695 = vmatpush1.msra.mxu0 %v1662
    %1696 = vmatprep.subr.mxu0 %v1659
    %1697 = vmatpush1.msra.mxu0 %v1658
    %1698 = vmatprep.subr.mxu0 %v1655
    %1699 = vmatpush1.msra.mxu0 %v1654
    %1700 = vmatprep.subr.mxu0 %v1651
    %1701 = vmatpush1.msra.mxu0 %v1650
    %1702 = vmatprep.subr.mxu0 %v1647
    %1703 = vmatpush1.msra.mxu0 %v1646
    %1704 = vmatprep.subr.mxu0 %v1643
    %1705 = vmatpush1.msra.mxu0 %v1642
    %1706 = vmatprep.subr.mxu0 %v1639
    %1707 = vmatpush1.msra.mxu0 %v1638
    %1708 = vmatprep.subr.mxu0 %v1635
    %1709 = vmatpush1.msra.mxu0 %v1634
    %1710 = vmatprep.subr.mxu0 0.0
    %1711 = vmatpush2.msra.mxu0 0.0
    %1712 = vmatprep.subr.mxu0 0.0
    %1713 = vmatpush2.msra.mxu0 0.0
    %1714 = vmatprep.subr.mxu0 0.0
    %1715 = vmatpush2.msra.mxu0 0.0
    %1716 = vmatprep.subr.mxu0 0.0
    %1717 = vmatpush2.msra.mxu0 0.0
    %1718 = vmatprep.subr.mxu0 0.0
    %1719 = vmatpush2.msra.mxu0 0.0
    %1720 = vmatprep.subr.mxu0 0.0
    %1721 = vmatpush2.msra.mxu0 0.0
    %1722 = vmatprep.subr.mxu0 0.0
    %1723 = vmatpush2.msra.mxu0 0.0
    %1724 = vmatprep.subr.mxu0 0.0
    %1725 = vmatpush2.msra.mxu0 0.0
    %1726 = vmatprep.subr.mxu0 0.0
    %1727 = vmatpush2.msra.mxu0 0.0
    %1728 = vmatprep.subr.mxu0 0.0
    %1729 = vmatpush2.msra.mxu0 0.0
    %1730 = vmatprep.subr.mxu0 0.0
    %1731 = vmatpush2.msra.mxu0 0.0
    %1732 = vmatprep.subr.mxu0 0.0
    %1733 = vmatpush2.msra.mxu0 0.0
    %1734 = vmatprep.subr.mxu0 0.0
    %1735 = vmatpush2.msra.mxu0 0.0
    %1736 = vmatprep.subr.mxu0 0.0
    %1737 = vmatpush2.msra.mxu0 0.0
    %1738 = vmatprep.subr.mxu0 0.0
    %1739 = vmatpush2.msra.mxu0 0.0
    %1740 = vmatprep.subr.mxu0 0.0
    %1741 = vmatpush2.msra.mxu0 0.0
    %1742 = vmatprep.mubr.f32.mxu0 0.0
    %1743 = vmatmul.mubr.f32.gmra.mxu0 %v1676
    %v1744 = vpop.f32.mrf.mxu0
    %v1745 = vadd.f32 %v1673, %v1744
    %v1746 = vpop.f32.mrf.mxu0
    %v1747 = vadd.f32 %v1673, %v1746
    %1748 = vdwg.mxu0
    %1749 = vmatprep.subr.mxu0 0.0
    %1750 = vmatpush1.msra.mxu0 0.0
    %1751 = vmatprep.subr.mxu0 0.0
    %1752 = vmatpush1.msra.mxu0 0.0
    %1753 = vmatprep.subr.mxu0 0.0
    %1754 = vmatpush1.msra.mxu0 0.0
    %1755 = vmatprep.subr.mxu0 0.0
    %1756 = vmatpush1.msra.mxu0 0.0
    %1757 = vmatprep.subr.mxu0 0.0
    %1758 = vmatpush1.msra.mxu0 0.0
    %1759 = vmatprep.subr.mxu0 0.0
    %1760 = vmatpush1.msra.mxu0 0.0
    %1761 = vmatprep.subr.mxu0 0.0
    %1762 = vmatpush1.msra.mxu0 0.0
    %1763 = vmatprep.subr.mxu0 %v1669
    %1764 = vmatpush1.msra.mxu0 %v1668
    %1765 = vmatprep.subr.mxu0 %v1665
    %1766 = vmatpush1.msra.mxu0 %v1664
    %1767 = vmatprep.subr.mxu0 %v1661
    %1768 = vmatpush1.msra.mxu0 %v1660
    %1769 = vmatprep.subr.mxu0 %v1657
    %1770 = vmatpush1.msra.mxu0 %v1656
    %1771 = vmatprep.subr.mxu0 %v1653
    %1772 = vmatpush1.msra.mxu0 %v1652
    %1773 = vmatprep.subr.mxu0 %v1649
    %1774 = vmatpush1.msra.mxu0 %v1648
    %1775 = vmatprep.subr.mxu0 %v1645
    %1776 = vmatpush1.msra.mxu0 %v1644
    %1777 = vmatprep.subr.mxu0 %v1641
    %1778 = vmatpush1.msra.mxu0 %v1640
    %1779 = vmatprep.subr.mxu0 %v1637
    %1780 = vmatpush1.msra.mxu0 %v1636
    %1781 = vmatprep.subr.mxu0 0.0
    %1782 = vmatpush2.msra.mxu0 0.0
    %1783 = vmatprep.subr.mxu0 0.0
    %1784 = vmatpush2.msra.mxu0 0.0
    %1785 = vmatprep.subr.mxu0 0.0
    %1786 = vmatpush2.msra.mxu0 0.0
    %1787 = vmatprep.subr.mxu0 0.0
    %1788 = vmatpush2.msra.mxu0 0.0
    %1789 = vmatprep.subr.mxu0 0.0
    %1790 = vmatpush2.msra.mxu0 0.0
    %1791 = vmatprep.subr.mxu0 0.0
    %1792 = vmatpush2.msra.mxu0 0.0
    %1793 = vmatprep.subr.mxu0 0.0
    %1794 = vmatpush2.msra.mxu0 0.0
    %1795 = vmatprep.subr.mxu0 0.0
    %1796 = vmatpush2.msra.mxu0 0.0
    %1797 = vmatprep.subr.mxu0 0.0
    %1798 = vmatpush2.msra.mxu0 0.0
    %1799 = vmatprep.subr.mxu0 0.0
    %1800 = vmatpush2.msra.mxu0 0.0
    %1801 = vmatprep.subr.mxu0 0.0
    %1802 = vmatpush2.msra.mxu0 0.0
    %1803 = vmatprep.subr.mxu0 0.0
    %1804 = vmatpush2.msra.mxu0 0.0
    %1805 = vmatprep.subr.mxu0 0.0
    %1806 = vmatpush2.msra.mxu0 0.0
    %1807 = vmatprep.subr.mxu0 0.0
    %1808 = vmatpush2.msra.mxu0 0.0
    %1809 = vmatprep.subr.mxu0 0.0
    %1810 = vmatpush2.msra.mxu0 0.0
    %1811 = vmatprep.subr.mxu0 0.0
    %1812 = vmatpush2.msra.mxu0 0.0
    %1813 = vmatprep.mubr.f32.mxu0 0.0
    %1814 = vmatmul.mubr.f32.gmra.mxu0 %v1676
    %v1815 = vpop.f32.mrf.mxu0
    %v1816 = vadd.f32 %v1673, %v1815
    %v1817 = vpop.f32.mrf.mxu0
    %v1818 = vadd.f32 %v1673, %v1817
    %1819 = vdwg.mxu0
    %v1820 = vmax.f32 %v1745, 0.0
    %v1821 = vmax.f32 %v1747, 0.0
    %v1822 = vmax.f32 %v1816, 0.0
    %v1823 = vmax.f32 %v1818, 0.0
    %1824 = vst [vmem:[#allocation4] sm:$0xff] %v1820
    %1825 = vst [vmem:[#allocation4 + $0x8] sm:$0xff] %v1821
    %1826 = vst [vmem:[#allocation4 + $0x10] sm:$0xff] %v1822
    %1827 = vst [vmem:[#allocation4 + $0x18] sm:$0xff] %v1823
    %v1828 = vld [vmem:[#allocation4] sm:$0xff]
    %v1829 = vld [vmem:[#allocation4 + $0x10] sm:$0xff]
    %v1830 = vld [vmem:[#allocation4] sm:$0xff]
    %v1831 = vld [vmem:[#allocation4 + $0x8] sm:$0xff]
    %v1832 = vld [vmem:[#allocation4 + $0x10] sm:$0xff]
    %v1833 = vld [vmem:[#allocation4 + $0x18] sm:$0xff]
    %v1834 = vld [vmem:[#allocation4 + $0x20] sm:$0xff]
    %1839 = vrot.lane.b32.xlu0 %v1830, 126
    %v1840 = vpop.permute.xlu0 %1839
    %1841 = vrot.lane.b32.xlu0 %v1831, 126
    %v1842 = vpop.permute.xlu0 %1841
    %1843 = vrot.lane.b32.xlu0 %v1832, 126
    %v1844 = vpop.permute.xlu0 %1843
    %1845 = vrot.lane.b32.xlu0 %v1833, 126
    %v1846 = vpop.permute.xlu0 %1845
    %v1847 = vsel %vm932, %v1840, %v1842
    %v1848 = vsel %vm932, %v1844, %v1846
    %v1851 = vmax.f32 %v1828, %v1847
    %v1852 = vmax.f32 %v1829, %v1848
    %1854 = vrot.lane.b32.xlu0 %v1834, 126
    %v1855 = vpop.permute.xlu0 %1854
    %v1856 = vsel %vm932, %v1842, %v1844
    %v1857 = vsel %vm932, %v1846, %v1855
    %v1860 = vmax.f32 %v1830, %v1847
    %v1861 = vmax.f32 %v1831, %v1856
    %v1862 = vmax.f32 %v1832, %v1848
    %v1863 = vmax.f32 %v1833, %v1857
    %v1865 = vmax.f32 %v1834, %v1855
    %1870 = vrot.lane.b32.xlu0 %v1860, 124
    %v1871 = vpop.permute.xlu0 %1870
    %1872 = vrot.lane.b32.xlu0 %v1861, 124
    %v1873 = vpop.permute.xlu0 %1872
    %1874 = vrot.lane.b32.xlu0 %v1862, 124
    %v1875 = vpop.permute.xlu0 %1874
    %1876 = vrot.lane.b32.xlu0 %v1863, 124
    %v1877 = vpop.permute.xlu0 %1876
    %vm1878 = vcmask 1014784
    %v1879 = vsel %vm1878, %v1871, %v1873
    %v1880 = vsel %vm1878, %v1875, %v1877
    %v1883 = vmax.f32 %v1851, %v1879
    %v1884 = vmax.f32 %v1852, %v1880
    %1886 = vrot.lane.b32.xlu0 %v1865, 124
    %v1887 = vpop.permute.xlu0 %1886
    %v1888 = vsel %vm1878, %v1873, %v1875
    %v1889 = vsel %vm1878, %v1877, %v1887
    %v1892 = vmax.f32 %v1860, %v1879
    %v1893 = vmax.f32 %v1861, %v1888
    %v1894 = vmax.f32 %v1862, %v1880
    %v1895 = vmax.f32 %v1863, %v1889
    %v1897 = vmax.f32 %v1865, %v1887
    %1902 = vrot.lane.b32.xlu0 %v1892, 96
    %v1903 = vpop.permute.xlu0 %1902
    %1904 = vrot.lane.b32.xlu0 %v1893, 96
    %v1905 = vpop.permute.xlu0 %1904
    %1906 = vrot.lane.b32.xlu0 %v1894, 96
    %v1907 = vpop.permute.xlu0 %1906
    %1908 = vrot.lane.b32.xlu0 %v1895, 96
    %v1909 = vpop.permute.xlu0 %1908
    %v1910 = vsel %vm999, %v1903, %v1905
    %v1911 = vsel %vm999, %v1907, %v1909
    %v1914 = vmax.f32 %v1883, %v1910
    %v1915 = vmax.f32 %v1884, %v1911
    %1917 = vrot.lane.b32.xlu0 %v1897, 96
    %v1918 = vpop.permute.xlu0 %1917
    %v1919 = vsel %vm999, %v1905, %v1907
    %v1920 = vsel %vm999, %v1909, %v1918
    %v1923 = vmax.f32 %v1892, %v1910
    %v1924 = vmax.f32 %v1893, %v1919
    %v1925 = vmax.f32 %v1894, %v1911
    %v1926 = vmax.f32 %v1895, %v1920
    %1931 = vrot.lane.b32.xlu0 %v1923, 64
    %v1932 = vpop.permute.xlu0 %1931
    %1933 = vrot.lane.b32.xlu0 %v1924, 64
    %v1934 = vpop.permute.xlu0 %1933
    %1935 = vrot.lane.b32.xlu0 %v1925, 64
    %v1936 = vpop.permute.xlu0 %1935
    %1937 = vrot.lane.b32.xlu0 %v1926, 64
    %v1938 = vpop.permute.xlu0 %1937
    %vm1939 = vcmask 523264
    %v1940 = vsel %vm1939, %v1932, %v1934
    %v1941 = vsel %vm1939, %v1936, %v1938
    %v1944 = vmax.f32 %v1914, %v1940
    %v1945 = vmax.f32 %v1915, %v1941
    %1946 = vst [vmem:[#allocation3] sm:$0xff] %v1944
    %1947 = vst [vmem:[#allocation3 + $0x20] sm:$0xff] %v1945
    %v1948 = vld [vmem:[#allocation3] sm:$0xff]
    %v1949 = vld [vmem:[#allocation3 + $0x20] sm:$0xff]
    %v1950 = vlaneseq
    %v1951 = vshrl.u32 %v1950, 7
    %v1952 = vadd.s32 %v1951, 8
    %v1953 = vadd.s32 %v1951, 16
    %v1954 = vadd.s32 %v1951, 24
    %v1955 = vadd.s32 %v1951, 32
    %v1956 = vadd.s32 %v1951, 40
    %v1957 = vadd.s32 %v1951, 48
    %v1958 = vadd.s32 %v1951, 56
    %v1959 = vadd.s32 %v1951, 64
    %v1960 = vadd.s32 %v1951, 72
    %v1961 = vadd.s32 %v1951, 80
    %v1962 = vadd.s32 %v1951, 88
    %v1963 = vadd.s32 %v1951, 96
    %v1964 = vadd.s32 %v1951, 104
    %v1965 = vadd.s32 %v1951, 112
    %v1966 = vadd.s32 %v1951, 120
    %v1967 = vlaneseq
    %v1968 = vand.u32 %v1967, 127
    %v1969 = vand.u32 %v1968, 3
    %v1970 = vshra.s32 %v1969, 1
    %v1971 = vmul.u32 %v1970, 64
    %v1972 = vand.u32 %v1969, 1
    %v1973 = vmul.u32 %v1972, 4
    %v1974 = vadd.s32 %v1971, %v1973
    %vm1975 = vcmp.eq.s32.totalorder %v1951, %v1974
    %vm1976 = vcmp.eq.s32.totalorder %v1952, %v1974
    %vm1977 = vcmp.eq.s32.totalorder %v1953, %v1974
    %vm1978 = vcmp.eq.s32.totalorder %v1954, %v1974
    %vm1979 = vcmp.eq.s32.totalorder %v1955, %v1974
    %vm1980 = vcmp.eq.s32.totalorder %v1956, %v1974
    %vm1981 = vcmp.eq.s32.totalorder %v1957, %v1974
    %vm1982 = vcmp.eq.s32.totalorder %v1958, %v1974
    %vm1983 = vcmp.eq.s32.totalorder %v1959, %v1974
    %vm1984 = vcmp.eq.s32.totalorder %v1960, %v1974
    %vm1985 = vcmp.eq.s32.totalorder %v1961, %v1974
    %vm1986 = vcmp.eq.s32.totalorder %v1962, %v1974
    %vm1987 = vcmp.eq.s32.totalorder %v1963, %v1974
    %vm1988 = vcmp.eq.s32.totalorder %v1964, %v1974
    %vm1989 = vcmp.eq.s32.totalorder %v1965, %v1974
    %vm1990 = vcmp.eq.s32.totalorder %v1966, %v1974
    %v1991 = vsel %vm1975, 1, 0
    %v1992 = vsel %vm1976, 1, 0
    %v1993 = vsel %vm1977, 1, 0
    %v1994 = vsel %vm1978, 1, 0
    %v1995 = vsel %vm1979, 1, 0
    %v1996 = vsel %vm1980, 1, 0
    %v1997 = vsel %vm1981, 1, 0
    %v1998 = vsel %vm1982, 1, 0
    %v1999 = vsel %vm1983, 1, 0
    %v2000 = vsel %vm1984, 1, 0
    %v2001 = vsel %vm1985, 1, 0
    %v2002 = vsel %vm1986, 1, 0
    %v2003 = vsel %vm1987, 1, 0
    %v2004 = vsel %vm1988, 1, 0
    %v2005 = vsel %vm1989, 1, 0
    %v2006 = vsel %vm1990, 1, 0
    %v2007 = vcvt.s32.f32 %v1991
    %v2008 = vcvt.s32.f32 %v1992
    %v2009 = vcvt.s32.f32 %v1993
    %v2010 = vcvt.s32.f32 %v1994
    %v2011 = vcvt.s32.f32 %v1995
    %v2012 = vcvt.s32.f32 %v1996
    %v2013 = vcvt.s32.f32 %v1997
    %v2014 = vcvt.s32.f32 %v1998
    %v2015 = vcvt.s32.f32 %v1999
    %v2016 = vcvt.s32.f32 %v2000
    %v2017 = vcvt.s32.f32 %v2001
    %v2018 = vcvt.s32.f32 %v2002
    %v2019 = vcvt.s32.f32 %v2003
    %v2020 = vcvt.s32.f32 %v2004
    %v2021 = vcvt.s32.f32 %v2005
    %v2022 = vcvt.s32.f32 %v2006
    %2023 = vmatprep.subr.mxu0 0.0
    %2024 = vmatpush1.msra.mxu0 %v2022
    %2025 = vmatprep.subr.mxu0 0.0
    %2026 = vmatpush1.msra.mxu0 %v2021
    %2027 = vmatprep.subr.mxu0 0.0
    %2028 = vmatpush1.msra.mxu0 %v2020
    %2029 = vmatprep.subr.mxu0 0.0
    %2030 = vmatpush1.msra.mxu0 %v2019
    %2031 = vmatprep.subr.mxu0 0.0
    %2032 = vmatpush1.msra.mxu0 %v2018
    %2033 = vmatprep.subr.mxu0 0.0
    %2034 = vmatpush1.msra.mxu0 %v2017
    %2035 = vmatprep.subr.mxu0 0.0
    %2036 = vmatpush1.msra.mxu0 %v2016
    %2037 = vmatprep.subr.mxu0 0.0
    %2038 = vmatpush1.msra.mxu0 %v2015
    %2039 = vmatprep.subr.mxu0 0.0
    %2040 = vmatpush1.msra.mxu0 %v2014
    %2041 = vmatprep.subr.mxu0 0.0
    %2042 = vmatpush1.msra.mxu0 %v2013
    %2043 = vmatprep.subr.mxu0 0.0
    %2044 = vmatpush1.msra.mxu0 %v2012
    %2045 = vmatprep.subr.mxu0 0.0
    %2046 = vmatpush1.msra.mxu0 %v2011
    %2047 = vmatprep.subr.mxu0 0.0
    %2048 = vmatpush1.msra.mxu0 %v2010
    %2049 = vmatprep.subr.mxu0 0.0
    %2050 = vmatpush1.msra.mxu0 %v2009
    %2051 = vmatprep.subr.mxu0 0.0
    %2052 = vmatpush1.msra.mxu0 %v2008
    %2053 = vmatprep.subr.mxu0 0.0
    %2054 = vmatpush1.msra.mxu0 %v2007
    %2055 = vmatprep.subr.mxu0 0.0
    %2056 = vmatpush2.msra.mxu0 0.0
    %2057 = vmatprep.subr.mxu0 0.0
    %2058 = vmatpush2.msra.mxu0 0.0
    %2059 = vmatprep.subr.mxu0 0.0
    %2060 = vmatpush2.msra.mxu0 0.0
    %2061 = vmatprep.subr.mxu0 0.0
    %2062 = vmatpush2.msra.mxu0 0.0
    %2063 = vmatprep.subr.mxu0 0.0
    %2064 = vmatpush2.msra.mxu0 0.0
    %2065 = vmatprep.subr.mxu0 0.0
    %2066 = vmatpush2.msra.mxu0 0.0
    %2067 = vmatprep.subr.mxu0 0.0
    %2068 = vmatpush2.msra.mxu0 0.0
    %2069 = vmatprep.subr.mxu0 0.0
    %2070 = vmatpush2.msra.mxu0 0.0
    %2071 = vmatprep.subr.mxu0 0.0
    %2072 = vmatpush2.msra.mxu0 0.0
    %2073 = vmatprep.subr.mxu0 0.0
    %2074 = vmatpush2.msra.mxu0 0.0
    %2075 = vmatprep.subr.mxu0 0.0
    %2076 = vmatpush2.msra.mxu0 0.0
    %2077 = vmatprep.subr.mxu0 0.0
    %2078 = vmatpush2.msra.mxu0 0.0
    %2079 = vmatprep.subr.mxu0 0.0
    %2080 = vmatpush2.msra.mxu0 0.0
    %2081 = vmatprep.subr.mxu0 0.0
    %2082 = vmatpush2.msra.mxu0 0.0
    %2083 = vmatprep.subr.mxu0 0.0
    %2084 = vmatpush2.msra.mxu0 0.0
    %2085 = vmatprep.subr.mxu0 0.0
    %2086 = vmatpush2.msra.mxu0 0.0
    %2087 = vmatprep.mubr.f32.mxu0 0.0
    %2088 = vmatmul.mubr.f32.gmra.mxu0 %v1948
    %v2089 = vpop.f32.mrf.mxu0
    %v2090 = vadd.f32 0.0, %v2089
    %v2091 = vpop.f32.mrf.mxu0
    %2092 = vmatprep.mubr.f32.mxu0 0.0
    %2093 = vmatmul.mubr.f32.gmra.mxu0 %v1949
    %v2094 = vpop.f32.mrf.mxu0
    %v2095 = vadd.f32 0.0, %v2094
    %v2096 = vpop.f32.mrf.mxu0
    %2097 = vdwg.mxu0
    %v2098 = vshra.s32 %v1968, 2
    %v2099 = vand.u32 %v1951, 7
    %v2100 = vand.u32 %v1952, 7
    %vm2101 = vcmp.eq.s32.totalorder %v2098, %v2099
    %vm2102 = vcmp.eq.s32.totalorder %v2098, %v2100
    %v2103 = vsel %vm2101, 1, 0
    %v2104 = vsel %vm2102, 1, 0
    %v2105 = vcvt.s32.f32 %v2103
    %v2106 = vcvt.s32.f32 %v2104
    %v2107 = vshra.s32 %v1968, 3
    %vm2108 = vcmp.eq.s32.totalorder %v2107, %v1951
    %v2109 = vsel %vm2108, 1, 0
    %v2110 = vcvt.s32.f32 %v2109
    %v2111 = vmul.f32 %v2090, %v2105
    %v2112 = vmul.f32 %v2095, %v2106
    %v2114 = vsel %vm184, %v2110, 0
    %2116 = vmatprep.subr.mxu0 0.0
    %2117 = vmatpush1.msra.mxu0 0.0
    %2118 = vmatprep.subr.mxu0 0.0
    %2119 = vmatpush1.msra.mxu0 0.0
    %2120 = vmatprep.subr.mxu0 0.0
    %2121 = vmatpush1.msra.mxu0 0.0
    %2122 = vmatprep.subr.mxu0 0.0
    %2123 = vmatpush1.msra.mxu0 0.0
    %2124 = vmatprep.subr.mxu0 0.0
    %2125 = vmatpush1.msra.mxu0 0.0
    %2126 = vmatprep.subr.mxu0 0.0
    %2127 = vmatpush1.msra.mxu0 0.0
    %2128 = vmatprep.subr.mxu0 0.0
    %2129 = vmatpush1.msra.mxu0 0.0
    %2130 = vmatprep.subr.mxu0 0.0
    %2131 = vmatpush1.msra.mxu0 0.0
    %2132 = vmatprep.subr.mxu0 0.0
    %2133 = vmatpush1.msra.mxu0 0.0
    %2134 = vmatprep.subr.mxu0 0.0
    %2135 = vmatpush1.msra.mxu0 0.0
    %2136 = vmatprep.subr.mxu0 0.0
    %2137 = vmatpush1.msra.mxu0 0.0
    %2138 = vmatprep.subr.mxu0 0.0
    %2139 = vmatpush1.msra.mxu0 0.0
    %2140 = vmatprep.subr.mxu0 0.0
    %2141 = vmatpush1.msra.mxu0 0.0
    %2142 = vmatprep.subr.mxu0 0.0
    %2143 = vmatpush1.msra.mxu0 0.0
    %2144 = vmatprep.subr.mxu0 0.0
    %2145 = vmatpush1.msra.mxu0 %v2112
    %2146 = vmatprep.subr.mxu0 0.0
    %2147 = vmatpush1.msra.mxu0 %v2111
    %2148 = vmatprep.subr.mxu0 0.0
    %2149 = vmatpush2.msra.mxu0 0.0
    %2150 = vmatprep.subr.mxu0 0.0
    %2151 = vmatpush2.msra.mxu0 0.0
    %2152 = vmatprep.subr.mxu0 0.0
    %2153 = vmatpush2.msra.mxu0 0.0
    %2154 = vmatprep.subr.mxu0 0.0
    %2155 = vmatpush2.msra.mxu0 0.0
    %2156 = vmatprep.subr.mxu0 0.0
    %2157 = vmatpush2.msra.mxu0 0.0
    %2158 = vmatprep.subr.mxu0 0.0
    %2159 = vmatpush2.msra.mxu0 0.0
    %2160 = vmatprep.subr.mxu0 0.0
    %2161 = vmatpush2.msra.mxu0 0.0
    %2162 = vmatprep.subr.mxu0 0.0
    %2163 = vmatpush2.msra.mxu0 0.0
    %2164 = vmatprep.subr.mxu0 0.0
    %2165 = vmatpush2.msra.mxu0 0.0
    %2166 = vmatprep.subr.mxu0 0.0
    %2167 = vmatpush2.msra.mxu0 0.0
    %2168 = vmatprep.subr.mxu0 0.0
    %2169 = vmatpush2.msra.mxu0 0.0
    %2170 = vmatprep.subr.mxu0 0.0
    %2171 = vmatpush2.msra.mxu0 0.0
    %2172 = vmatprep.subr.mxu0 0.0
    %2173 = vmatpush2.msra.mxu0 0.0
    %2174 = vmatprep.subr.mxu0 0.0
    %2175 = vmatpush2.msra.mxu0 0.0
    %2176 = vmatprep.subr.mxu0 0.0
    %2177 = vmatpush2.msra.mxu0 0.0
    %2178 = vmatprep.subr.mxu0 0.0
    %2179 = vmatpush2.msra.mxu0 0.0
    %2180 = vmatprep.mubr.f32.mxu0 0.0
    %2181 = vmatmul.mubr.f32.gmra.mxu0 %v2114
    %v2182 = vpop.f32.mrf.mxu0
    %v2183 = vadd.f32 0.0, %v2182
    %v2184 = vpop.f32.mrf.mxu0
    %2185 = vdwg.mxu0
    %v2186 = vld [vmem:[%s2 + $0x10] sm:$0xff]
    %v2187 = vld [vmem:[%s2 + $0x18] sm:$0xff]
    %v2188 = vld [vmem:[%s2 + $0x20] sm:$0xff]
    %v2189 = vld [vmem:[%s2 + $0x28] sm:$0xff]
    %v2190 = vld [vmem:[%s2 + $0x30] sm:$0x1]
    %v2191 = vld [vmem:[%s2 + $0x38] sm:$0xff]
    %v2192 = vld [vmem:[%s2 + $0x40] sm:$0xff]
    %v2193 = vld [vmem:[%s2 + $0x48] sm:$0xff]
    %v2194 = vld [vmem:[%s2 + $0x50] sm:$0xff]
    %v2195 = vld [vmem:[%s2 + $0x58] sm:$0xff]
    %v2196 = vld [vmem:[%s2 + $0x60] sm:$0xff]
    %v2197 = vld [vmem:[%s2 + $0x68] sm:$0xff]
    %v2198 = vld [vmem:[%s2 + $0x70] sm:$0xff]
    %v2199 = vld [vmem:[%s2 + $0x78] sm:$0x1]
    %v2200 = vlaneseq
    %v2201 = vshrl.u32 %v2200, 7
    %v2202 = vsub.s32 0, %v2201
    %v2203 = vrot.slane %v2190, %v2202
    %v2205 = vsel %vm1150, %v2183, 0
    %2207 = vmatprep.subr.mxu0 0.0
    %2208 = vmatpush1.msra.mxu0 0.0
    %2209 = vmatprep.subr.mxu0 0.0
    %2210 = vmatpush1.msra.mxu0 0.0
    %2211 = vmatprep.subr.mxu0 0.0
    %2212 = vmatpush1.msra.mxu0 0.0
    %2213 = vmatprep.subr.mxu0 0.0
    %2214 = vmatpush1.msra.mxu0 0.0
    %2215 = vmatprep.subr.mxu0 0.0
    %2216 = vmatpush1.msra.mxu0 0.0
    %2217 = vmatprep.subr.mxu0 0.0
    %2218 = vmatpush1.msra.mxu0 0.0
    %2219 = vmatprep.subr.mxu0 0.0
    %2220 = vmatpush1.msra.mxu0 0.0
    %2221 = vmatprep.subr.mxu0 0.0
    %2222 = vmatpush1.msra.mxu0 0.0
    %2223 = vmatprep.subr.mxu0 0.0
    %2224 = vmatpush1.msra.mxu0 0.0
    %2225 = vmatprep.subr.mxu0 0.0
    %2226 = vmatpush1.msra.mxu0 0.0
    %2227 = vmatprep.subr.mxu0 0.0
    %2228 = vmatpush1.msra.mxu0 0.0
    %2229 = vmatprep.subr.mxu0 0.0
    %2230 = vmatpush1.msra.mxu0 0.0
    %2231 = vmatprep.subr.mxu0 0.0
    %2232 = vmatpush1.msra.mxu0 %v2189
    %2233 = vmatprep.subr.mxu0 0.0
    %2234 = vmatpush1.msra.mxu0 %v2188
    %2235 = vmatprep.subr.mxu0 0.0
    %2236 = vmatpush1.msra.mxu0 %v2187
    %2237 = vmatprep.subr.mxu0 0.0
    %2238 = vmatpush1.msra.mxu0 %v2186
    %2239 = vmatprep.subr.mxu0 0.0
    %2240 = vmatpush2.msra.mxu0 0.0
    %2241 = vmatprep.subr.mxu0 0.0
    %2242 = vmatpush2.msra.mxu0 0.0
    %2243 = vmatprep.subr.mxu0 0.0
    %2244 = vmatpush2.msra.mxu0 0.0
    %2245 = vmatprep.subr.mxu0 0.0
    %2246 = vmatpush2.msra.mxu0 0.0
    %2247 = vmatprep.subr.mxu0 0.0
    %2248 = vmatpush2.msra.mxu0 0.0
    %2249 = vmatprep.subr.mxu0 0.0
    %2250 = vmatpush2.msra.mxu0 0.0
    %2251 = vmatprep.subr.mxu0 0.0
    %2252 = vmatpush2.msra.mxu0 0.0
    %2253 = vmatprep.subr.mxu0 0.0
    %2254 = vmatpush2.msra.mxu0 0.0
    %2255 = vmatprep.subr.mxu0 0.0
    %2256 = vmatpush2.msra.mxu0 0.0
    %2257 = vmatprep.subr.mxu0 0.0
    %2258 = vmatpush2.msra.mxu0 0.0
    %2259 = vmatprep.subr.mxu0 0.0
    %2260 = vmatpush2.msra.mxu0 0.0
    %2261 = vmatprep.subr.mxu0 0.0
    %2262 = vmatpush2.msra.mxu0 0.0
    %2263 = vmatprep.subr.mxu0 0.0
    %2264 = vmatpush2.msra.mxu0 0.0
    %2265 = vmatprep.subr.mxu0 0.0
    %2266 = vmatpush2.msra.mxu0 0.0
    %2267 = vmatprep.subr.mxu0 0.0
    %2268 = vmatpush2.msra.mxu0 0.0
    %2269 = vmatprep.subr.mxu0 0.0
    %2270 = vmatpush2.msra.mxu0 0.0
    %2271 = vmatprep.mubr.f32.mxu0 0.0
    %2272 = vmatmul.mubr.f32.gmra.mxu0 %v2205
    %v2273 = vpop.f32.mrf.mxu0
    %v2274 = vadd.f32 %v2203, %v2273
    %v2275 = vpop.f32.mrf.mxu0
    %2276 = vdwg.mxu0
    %v2277 = vmax.f32 %v2274, 0.0
    %v2278 = vlaneseq
    %v2279 = vshrl.u32 %v2278, 7
    %v2280 = vsub.s32 0, %v2279
    %v2281 = vrot.slane %v2199, %v2280
    %v2283 = vsel %vm1939, %v2277, 0
    %2285 = vmatprep.subr.mxu0 0.0
    %2286 = vmatpush1.msra.mxu0 0.0
    %2287 = vmatprep.subr.mxu0 0.0
    %2288 = vmatpush1.msra.mxu0 0.0
    %2289 = vmatprep.subr.mxu0 0.0
    %2290 = vmatpush1.msra.mxu0 0.0
    %2291 = vmatprep.subr.mxu0 0.0
    %2292 = vmatpush1.msra.mxu0 0.0
    %2293 = vmatprep.subr.mxu0 0.0
    %2294 = vmatpush1.msra.mxu0 0.0
    %2295 = vmatprep.subr.mxu0 0.0
    %2296 = vmatpush1.msra.mxu0 0.0
    %2297 = vmatprep.subr.mxu0 0.0
    %2298 = vmatpush1.msra.mxu0 0.0
    %2299 = vmatprep.subr.mxu0 0.0
    %2300 = vmatpush1.msra.mxu0 0.0
    %2301 = vmatprep.subr.mxu0 0.0
    %2302 = vmatpush1.msra.mxu0 %v2198
    %2303 = vmatprep.subr.mxu0 0.0
    %2304 = vmatpush1.msra.mxu0 %v2197
    %2305 = vmatprep.subr.mxu0 0.0
    %2306 = vmatpush1.msra.mxu0 %v2196
    %2307 = vmatprep.subr.mxu0 0.0
    %2308 = vmatpush1.msra.mxu0 %v2195
    %2309 = vmatprep.subr.mxu0 0.0
    %2310 = vmatpush1.msra.mxu0 %v2194
    %2311 = vmatprep.subr.mxu0 0.0
    %2312 = vmatpush1.msra.mxu0 %v2193
    %2313 = vmatprep.subr.mxu0 0.0
    %2314 = vmatpush1.msra.mxu0 %v2192
    %2315 = vmatprep.subr.mxu0 0.0
    %2316 = vmatpush1.msra.mxu0 %v2191
    %2317 = vmatprep.subr.mxu0 0.0
    %2318 = vmatpush2.msra.mxu0 0.0
    %2319 = vmatprep.subr.mxu0 0.0
    %2320 = vmatpush2.msra.mxu0 0.0
    %2321 = vmatprep.subr.mxu0 0.0
    %2322 = vmatpush2.msra.mxu0 0.0
    %2323 = vmatprep.subr.mxu0 0.0
    %2324 = vmatpush2.msra.mxu0 0.0
    %2325 = vmatprep.subr.mxu0 0.0
    %2326 = vmatpush2.msra.mxu0 0.0
    %2327 = vmatprep.subr.mxu0 0.0
    %2328 = vmatpush2.msra.mxu0 0.0
    %2329 = vmatprep.subr.mxu0 0.0
    %2330 = vmatpush2.msra.mxu0 0.0
    %2331 = vmatprep.subr.mxu0 0.0
    %2332 = vmatpush2.msra.mxu0 0.0
    %2333 = vmatprep.subr.mxu0 0.0
    %2334 = vmatpush2.msra.mxu0 0.0
    %2335 = vmatprep.subr.mxu0 0.0
    %2336 = vmatpush2.msra.mxu0 0.0
    %2337 = vmatprep.subr.mxu0 0.0
    %2338 = vmatpush2.msra.mxu0 0.0
    %2339 = vmatprep.subr.mxu0 0.0
    %2340 = vmatpush2.msra.mxu0 0.0
    %2341 = vmatprep.subr.mxu0 0.0
    %2342 = vmatpush2.msra.mxu0 0.0
    %2343 = vmatprep.subr.mxu0 0.0
    %2344 = vmatpush2.msra.mxu0 0.0
    %2345 = vmatprep.subr.mxu0 0.0
    %2346 = vmatpush2.msra.mxu0 0.0
    %2347 = vmatprep.subr.mxu0 0.0
    %2348 = vmatpush2.msra.mxu0 0.0
    %2349 = vmatprep.mubr.f32.mxu0 0.0
    %2350 = vmatmul.mubr.f32.gmra.mxu0 %v2283
    %v2351 = vpop.f32.mrf.mxu0
    %v2352 = vadd.f32 %v2281, %v2351
    %v2353 = vpop.f32.mrf.mxu0
    %2354 = vdwg.mxu0
    %vm2355 = vcmask 33792
    %v2356 = vsel %vm2355, %v2352, -inf
    %2357 = vmax.xlane.f32.xlu0 %v2356
    %v2358 = vpop.xlane.xlu0 %2357
    %v2359 = vsub.f32 %v2352, %v2358
    %v2360 = vmul.f32 %v2359, 1.442695
    %v2361 = vpow.pop %v2360
    %v2362 = vsel %vm2355, %v2361, 0.0
    %2363 = vadd.xlane.f32.xlu0 %v2362
    %v2364 = vpop.xlane.xlu0 %2363
    %v2365 = vrcp.pop %v2364
    %v2366 = vmul.f32 %v2361, %v2365
    %2367 = vst.msk [vmem:[#allocation8] sm:$0x3] %vm2355, %v2366
    // Predicated region
    $region18: #{actor_forward.1} parent=1 // pred_check
      _
    $region19: #{actor_forward.1} parent=1 // pred_check_branch
      %2369 = sbr.rel (0) target = $region21
    $region20: #{actor_forward.1} parent=1 // pred_region
      %s2371 = ssub.s32 32, 32
      %2372 = vsyncadd [#allocation7], %s2371
      %s2374 = sshll.u32 [#allocation8], 4
      %s2375 = int_to_ptr.vmem [resolvable:$true] %s2374
      %2377 = dma.vmem_to_hbm [thread:$0]  %s2375, 32, %s3, [#allocation7]
    $region21: #{actor_forward.1} parent=1 // pred_fallthru
      _
    // Predicated region
    $region22: #{actor_forward.1} parent=1 // pred_check
      _
    $region23: #{actor_forward.1} parent=1 // pred_check_branch
      %2379 = sbr.rel (0) target = $region25
    $region24: #{actor_forward.1} parent=1 // pred_region
      %2380 = dma.done [#allocation7], 32
    $region25: #{actor_forward.1} parent=1 // pred_fallthru
      _
    %2381 = vsyncpa [#allocation6], 1
    %2382 = vsyncpa [#allocation7], 1

</llo_original>
